<compile_context>
chip_gen: v6e
topology: v6e:2x2x1
jax: 0.10.0
libtpu: 0.0.40
codegen_flags: <defaults>
</compile_context>

<pallas_src>
import jax
import jax.numpy as jnp
from jax.experimental import pallas as pl
from jax.experimental.pallas import tpu as pltpu


# ----------------------------- kernel -------------------------------------- #

def _make_row_sum_kernel(n_cols, tk, need_col_mask):
    """Row-sum kernel over a (grid_rows, grid_k) tiling of cond_mat.

    Grid axes: (row tile i [parallel], column tile k [arbitrary, innermost]).
    The (TM, 1) output block index is constant along k, so Pallas keeps it
    resident in VMEM across the K sweep -> it doubles as the f32 accumulator.
    """

    def kernel(x_ref, out_ref):
        k = pl.program_id(1)

        @pl.when(k == 0)
        def _():
            out_ref[...] = jnp.zeros_like(out_ref)

        # Widen to f32 for accumulation (HBM traffic stays in the native dtype;
        # the widening temp is accounted for in the VMEM budget below).
        tile = x_ref[...].astype(jnp.float32)

        if need_col_mask:
            # Only the last K block can contain out-of-bounds (garbage) columns.
            # Use a lane-only (1, tk) iota so the mask itself stays tiny.
            col_ids = jax.lax.broadcasted_iota(jnp.int32, (1, tk), 1) + k * tk
            tile = jnp.where(col_ids < n_cols, tile, jnp.float32(0.0))

        out_ref[...] += jnp.sum(tile, axis=1, keepdims=True)

    return kernel


# ----------------------------- tiling -------------------------------------- #

_VMEM_BUDGET_BYTES = 24 * 1024 * 1024   # working-set budget for the input slab
_VMEM_LIMIT_BYTES = 32 * 1024 * 1024    # safe on v5e / v6e / v7x


def _round_up(x, m):
    return ((x + m - 1) // m) * m


def _round_down(x, m):
    return (x // m) * m


def _pick_tiles(n_rows, n_cols, itemsize):
    """Pick (TM, TK).

    TM: aim for ~8 row-grid steps (good pipeline overlap, even 2-TC split on
        v7x), clamped to [256, 1024] and a multiple of 8 (or full extent).
    TK: largest multiple of 128 whose footprint fits the VMEM budget,
        accounting for the double-buffered input slab, the f32 widening temp
        for sub-32-bit inputs, and slack for elementwise intermediates.
    """
    if n_rows <= 256:
        tm = n_rows                       # full-extent block is always legal
    else:
        tm = _round_up(pl.cdiv(n_rows, 8), 8)
        tm = max(256, min(1024, tm))
        tm = min(tm, n_rows)

    widen = 4 if itemsize < 4 else 0      # bf16/int8 -> f32 full-tile temporary
    bytes_per_col = tm * (2 * itemsize + widen + 4)   # +4: elementwise slack
    max_tk = _VMEM_BUDGET_BYTES // max(bytes_per_col, 1)
    if max_tk >= n_cols:
        tk = n_cols                       # single K step, no masking needed
    else:
        tk = max(128, _round_down(max_tk, 128))
    return tm, tk


# ----------------------------- wrapper ------------------------------------- #

def current_vector(first_cam_trap, last_cam_trap, cond_mat, *,
                   tile_rows=None, tile_cols=None):
    """Pallas equivalent of CurrentVector.forward. Returns (N, 1) float32."""
    del first_cam_trap  # unused in the reference module
    n_rows, n_cols = cond_mat.shape
    itemsize = jnp.dtype(cond_mat.dtype).itemsize

    tm, tk = _pick_tiles(n_rows, n_cols, itemsize)
    if tile_rows is not None:
        tm = tile_rows
    if tile_cols is not None:
        tk = tile_cols
    tm = min(tm, n_rows)
    tk = min(tk, n_cols)

    need_col_mask = (n_cols % tk) != 0
    grid = (pl.cdiv(n_rows, tm), pl.cdiv(n_cols, tk))

    row_sums = pl.pallas_call(
        _make_row_sum_kernel(n_cols, tk, need_col_mask),
        out_shape=jax.ShapeDtypeStruct((n_rows, 1), jnp.float32),
        grid=grid,
        in_specs=[pl.BlockSpec((tm, tk), lambda i, k: (i, k))],
        out_specs=pl.BlockSpec((tm, 1), lambda i, k: (i, 0)),
        compiler_params=pltpu.CompilerParams(
            dimension_semantics=("parallel", "arbitrary"),
            vmem_limit_bytes=_VMEM_LIMIT_BYTES,
        ),
    )(cond_mat)

    # Fixup epilogue in plain jnp (a few KB of work; XLA fuses it — avoids a
    # second Mosaic launch whose fixed overhead rivals pass-1 at small N).
    # Reproduces the torch in-place order: zero the entry, then write -sum.
    last_idx = jnp.asarray(last_cam_trap, dtype=jnp.int32)
    is_last = jnp.arange(n_rows, dtype=jnp.int32)[:, None] == last_idx
    zeroed = jnp.where(is_last, jnp.float32(0.0), row_sums)
    return jnp.where(is_last, -jnp.sum(zeroed), zeroed)


# ------------------------------ demo ---------------------------------------- #

def _reference(last_cam_trap, cond_mat):
    ref = cond_mat.astype(jnp.float32).sum(axis=1).reshape(-1, 1)
    ref = ref.at[last_cam_trap].set(0.0)
    ref = ref.at[last_cam_trap].set(-1.0 * ref.sum())
    return ref


if __name__ == "__main__":
    key = jax.random.PRNGKey(0)
    k1, k2 = jax.random.split(key)

    # Case 1: square f32 matrix — exercises the auto-picked row-tiled,
    # pipelined path (TM=256 -> 8 grid steps, single K block).
    N = 2048
    cond_mat = jax.random.uniform(k1, (N, N), dtype=jnp.float32)
    first_cam_trap, last_cam_trap = 0, 5
    out = jax.block_until_ready(
        current_vector(first_cam_trap, last_cam_trap, cond_mat))
    ref = _reference(last_cam_trap, cond_mat)
    assert out.shape == (N, 1) and out.dtype == jnp.float32
    assert jnp.allclose(out, ref, rtol=1e-5, atol=1e-4), "case 1 mismatch"

    # Case 2: non-divisible bf16 shape with forced small tiles — exercises the
    # column (K) reduction axis, last-block column masking, and the discard of
    # padded rows on writeback.
    R, C = 300, 520
    cond2 = jax.random.uniform(k2, (R, C), dtype=jnp.float32).astype(jnp.bfloat16)
    out2 = jax.block_until_ready(
        current_vector(0, 17, cond2, tile_rows=128, tile_cols=256))
    ref2 = _reference(17, cond2)
    assert out2.shape == (R, 1) and out2.dtype == jnp.float32
    assert jnp.allclose(out2, ref2, rtol=1e-4, atol=1e-2), "case 2 mismatch"

    print("KERNEL_OK")
</pallas_src>

<mosaic_0001>
module attributes {stable_mosaic.version = 11 : i64} {
  func.func @kernel(%arg0: i32, %arg1: i32, %arg2: memref<256x2048xf32, #tpu.memory_space<vmem>>, %arg3: memref<256x1xf32, #tpu.memory_space<vmem>>) attributes {dimension_semantics = [#tpu.dimension_semantics<parallel>, #tpu.dimension_semantics<arbitrary>], iteration_bounds = array<i64: 8, 1>, scalar_prefetch = 0 : i64, scratch_operands = 0 : i64, tpu.core_type = #tpu.core_type<tc>, window_params = [{transform_indices = @transform_0, window_bounds = array<i64: 256, 2048>}, {transform_indices = @transform_1, window_bounds = array<i64: 256, 1>}]} {
    %c0_i32 = arith.constant 0 : i32
    %0 = arith.cmpi eq, %arg1, %c0_i32 : i32
    %1 = arith.extui %0 : i1 to i32
    %c0_i32_0 = arith.constant 0 : i32
    %2 = arith.cmpi ne, %1, %c0_i32_0 : i32
    scf.if %2 {
      %cst_6 = arith.constant 0.000000e+00 : f32
      %9 = vector.broadcast %cst_6 : f32 to vector<256x1xf32>
      %c0_7 = arith.constant 0 : index
      %c0_8 = arith.constant 0 : index
      %10 = vector.load %arg3[%c0_7, %c0_8] : memref<256x1xf32, #tpu.memory_space<vmem>>, vector<256x1xf32>
      tpu.vector_store %arg3[%c0_7, %c0_8], %9 {strides = array<i32>} : memref<256x1xf32, #tpu.memory_space<vmem>>, vector<256x1xf32>,
    } else {
    }
    %c0 = arith.constant 0 : index
    %c0_1 = arith.constant 0 : index
    %3 = vector.load %arg2[%c0, %c0_1] : memref<256x2048xf32, #tpu.memory_space<vmem>>, vector<256x2048xf32>
    %c0_2 = arith.constant 0 : index
    %c0_3 = arith.constant 0 : index
    %4 = vector.load %arg3[%c0_2, %c0_3] : memref<256x1xf32, #tpu.memory_space<vmem>>, vector<256x1xf32>
    %cst = arith.constant dense<0.000000e+00> : vector<256xf32>
    %5 = vector.multi_reduction <add>, %3, %cst [1] : vector<256x2048xf32> to vector<256xf32>
    %6 = vector.shape_cast %5 : vector<256xf32> to vector<256x1xf32>
    %7 = arith.addf %4, %6 : vector<256x1xf32>
    %c0_4 = arith.constant 0 : index
    %c0_5 = arith.constant 0 : index
    %8 = vector.load %arg3[%c0_4, %c0_5] : memref<256x1xf32, #tpu.memory_space<vmem>>, vector<256x1xf32>
    tpu.vector_store %arg3[%c0_4, %c0_5], %7 {strides = array<i32>} : memref<256x1xf32, #tpu.memory_space<vmem>>, vector<256x1xf32>,
    return
  }
  func.func @transform_0(%arg0: i32, %arg1: i32) -> (i32, i32) {
    %c0_i32 = arith.constant 0 : i32
    return %arg0, %arg1 : i32, i32
  }
  func.func @transform_1(%arg0: i32, %arg1: i32) -> (i32, i32) {
    %c0_i32 = arith.constant 0 : i32
    %c0_i32_0 = arith.constant 0 : i32
    return %arg0, %c0_i32 : i32, i32
  }
}

</mosaic_0001>

<llo_original>
// kernel: tpu_custom_call.1
$region0: #{tpu_custom_call.1}
  #allocation0 [shape = 'u32[]', space=smem, size = 0x4, offset = 0x4, fixed_abs, tag = 'smem constant byte address 0x4 - core index']
  #allocation1 [shape = 'u32[144,128]{1,0:T(1,128)}', space=vmem, size = 0x12000, scoped, tag = 'internal scratch']
  %s0 = inlined_call_operand.hbm [shape: f32[2048,2048], index: 0, kind: input, shape index: {}]
  %s1 = inlined_call_operand.vmem [shape: f32[2048,1], index: 1, kind: output, shape index: {}]
  %s2 = sld [smem:[#allocation0]]
  $region45: #{tpu_custom_call.1} parent=0
    _
  %s4 = ssub.s32 1, %s2
  %s5 = scalar_select 0, %s4, %s2
  $region1: #{tpu_custom_call.1} parent=0
    #allocation2 [shape = 'u8[4194304]{0}', space=vmem, size = 0x400000, scoped, tag = 'input window, operand 0']
    #allocation3 [shape = 's32[2]{0}', space=sflag, size = 0x8, scoped, tag = 'scoped memory for tpu_custom_call.1']
    %6 = vsyncpa [#allocation3], 0
    %s7 = scalar_lea.sflag [#allocation3], 1
    %8 = vsyncpa %s7, 0
    loop: start=0, step=1, limit=10
    $region2: #{tpu_custom_call.1} parent=1 // loop_pre_header
      _
    $region3: #{tpu_custom_call.1} parent=1 // loop_header
      %s10 = sphi 0, %s14
      %p11 = scmp.ge.s32.totalorder %s10, 10
      %s17 = sphi 0, %s29
      %s18 = sphi 0, %s25
      %s19 = sphi 0, %s17
      %s20 = sphi 0, %s18
      %s21 = sphi 0, %s19
      %s22 = sphi 0, %s20
      %s34 = sphi 0, %s36
      %s37 = sphi 0, %s34
      %s38 = sphi 0, %s37
      %s54 = sphi 0, %s38
      %s60 = sphi 0, %s62
      %s63 = sphi 0, %s60
      %s64 = sphi 0, %s63
      %s80 = sphi 0, %s64
    $region4: #{tpu_custom_call.1} parent=1 // loop_header_branch
      %13 = sbr.rel (%p11) target = $region8
    $region5: #{tpu_custom_call.1} parent=1 // loop_body
      %s15 = ssub.s32 %s10, 1
      %s16 = ssub.s32 %s10, 2
      %s23 = sadd.s32 1, %s18
      %p24 = scmp.ge.s32.totalorder %s23, 1
      %s25 = scalar_select %p24, 0, %s23
      %s26 = sadd.s32 1, %s17
      %s27 = scalar_select %p24, %s26, %s17
      %p28 = scmp.ge.s32.totalorder %s27, 8
      %s29 = scalar_select %p28, 0, %s27
      %s30 = ssub.s32 %s17, %s29
      %s31 = ssub.s32 %s18, %s25
      %s32 = sor.u32 %s30, %s31
      %p33 = scmp.eq.s32.totalorder %s32, 0
      %s35 = sadd.s32 %s34, 1
      %s36 = scalar_select %p33, %s34, %s35
      %p39 = pneg %p33
      %p40 = scmp.eq.s32.totalorder %s10, 7
      %p41 = por %p39, %p40
      %p42 = scmp.ne.s32.totalorder %s34, %s37
      %p43 = scmp.eq.s32.totalorder %s10, 0
      %p44 = por %p42, %p43
      %p45 = scmp.ne.s32.totalorder %s34, %s37
      %p46 = scmp.eq.s32.totalorder %s15, 7
      %p47 = por %p45, %p46
      %p48 = scmp.ne.s32.totalorder %s37, %s38
      %p49 = scmp.eq.s32.totalorder %s15, 0
      %p50 = por %p48, %p49
      %p51 = scmp.ne.s32.totalorder %s37, %s38
      %p52 = scmp.eq.s32.totalorder %s16, 7
      %p53 = por %p51, %p52
      %p55 = scmp.ne.s32.totalorder %s38, %s54
      %p56 = scmp.eq.s32.totalorder %s16, 0
      %p57 = por %p55, %p56
      %s58 = ssub.s32 %s17, %s29
      %p59 = scmp.eq.s32.totalorder %s58, 0
      %s61 = sadd.s32 %s60, 1
      %s62 = scalar_select %p59, %s60, %s61
      %p65 = pneg %p59
      %p66 = scmp.eq.s32.totalorder %s10, 7
      %p67 = por %p65, %p66
      %p68 = scmp.ne.s32.totalorder %s60, %s63
      %p69 = scmp.eq.s32.totalorder %s10, 0
      %p70 = por %p68, %p69
      %p71 = scmp.ne.s32.totalorder %s60, %s63
      %p72 = scmp.eq.s32.totalorder %s15, 7
      %p73 = por %p71, %p72
      %p74 = scmp.ne.s32.totalorder %s63, %s64
      %p75 = scmp.eq.s32.totalorder %s15, 0
      %p76 = por %p74, %p75
      %p77 = scmp.ne.s32.totalorder %s63, %s64
      %p78 = scmp.eq.s32.totalorder %s16, 7
      %p79 = por %p77, %p78
      %p81 = scmp.ne.s32.totalorder %s64, %s80
      %p82 = scmp.eq.s32.totalorder %s16, 0
      %p83 = por %p81, %p82
      %p84 = scmp.le.s32.totalorder 1, %s10
      %p85 = scmp.lt.s32.totalorder %s10, 9
      %p86 = pnand %p84, %p85
      %p87 = pneg %p86
      // Predicated region
      $region9: #{tpu_custom_call.1} parent=5 // pred_check
        _
      $region10: #{tpu_custom_call.1} parent=5 // pred_check_branch
        %89 = sbr.rel (%p86) target = $region12
      $region11: #{tpu_custom_call.1} parent=5 // pred_region
        %s90 = ssub.s32 %s10, 1
      $region12: #{tpu_custom_call.1} parent=5 // pred_fallthru
        _
      %p91 = scmp.lt.s32.totalorder %s10, 8
      // Predicated region
      $region13: #{tpu_custom_call.1} parent=5 // pred_check
        %p92 = pneg %p91
      $region14: #{tpu_custom_call.1} parent=5 // pred_check_branch
        %94 = sbr.rel (%p92) target = $region16
      $region15: #{tpu_custom_call.1} parent=5 // pred_region
        // Predicated region
        $region17: #{tpu_custom_call.1} parent=15 // pred_check
          %p95 = pneg %p44
        $region18: #{tpu_custom_call.1} parent=15 // pred_check_branch
          %97 = sbr.rel (%p95) target = $region20
        $region19: #{tpu_custom_call.1} parent=15 // pred_region
          %s98 = sand.u32 %s34, 1
          %s99 = scalar_lea.sflag [#allocation3], %s98
          %s100 = sand.u32 %s34, 1
          %s101 = smul.addr %s100, 4096
          %s102 = scalar_lea.vmem [#allocation2], %s101
          %s103 = smul.u32 32, %s17
          %s104 = smul.u32 16, %s18
          %s106 = ssub.s32 65536, 65536
          %107 = vsyncadd %s99, %s106
          %s108 = smul.addr %s103, 16
          %s109 = sadd.s32 %s104, %s108
          %s110 = smul.addr %s109, 128
          %s111 = scalar_lea.hbm %s0, %s110
          %s112 = sshll.u32 %s102, 4
          %s113 = int_to_ptr.vmem [resolvable:$true] %s112
          %118 = dma.hbm_to_vmem [thread:$0]  %s111, 65536, %s113, %s99, 2048, 2048, 128
        $region20: #{tpu_custom_call.1} parent=15 // pred_fallthru
          _
      $region16: #{tpu_custom_call.1} parent=5 // pred_fallthru
        _
      %p119 = scmp.le.s32.totalorder 1, %s10
      %p120 = scmp.lt.s32.totalorder %s10, 9
      %p121 = pnand %p119, %p120
      %p122 = pneg %p121
      // Predicated region
      $region21: #{tpu_custom_call.1} parent=5 // pred_check
        _
      $region22: #{tpu_custom_call.1} parent=5 // pred_check_branch
        %124 = sbr.rel (%p121) target = $region24
      $region23: #{tpu_custom_call.1} parent=5 // pred_region
        %s125 = ssub.s32 %s10, 1
        %s126 = sand.u32 %s37, 1
        %s127 = scalar_lea.sflag [#allocation3], %s126
        %s128 = sand.u32 %s37, 1
        %s129 = smul.addr %s128, 4096
        %s130 = scalar_lea.vmem [#allocation2], %s129
        // Predicated region
        $region25: #{tpu_custom_call.1} parent=23 // pred_check
          %p131 = pneg %p50
        $region26: #{tpu_custom_call.1} parent=23 // pred_check_branch
          %133 = sbr.rel (%p131) target = $region28
        $region27: #{tpu_custom_call.1} parent=23 // pred_region
          %134 = dma.done %s127, 65536
        $region28: #{tpu_custom_call.1} parent=23 // pred_fallthru
          _
        %s135 = sand.u32 %s37, 1
        %s136 = scalar_lea.sflag [#allocation3], %s135
        %s137 = sand.u32 %s37, 1
        %s138 = smul.addr %s137, 4096
        %s139 = scalar_lea.vmem [#allocation2], %s138
        %p140 = pneg %p50
        %p141 = pneg %p47
        %p142 = pneg %p76
        %p143 = pneg %p73
        %s144 = smul.u32 32, %s19
        %p145 = scmp.lt.s32.totalorder %s144, 255
        %s146 = scalar_select %p145, %s144, 255
        %s147 = smul.addr %s146, 8
        %s148 = scalar_lea.vmem %s1, %s147
        %s149 = smul.u32 32, %s19
        %s150 = smul.u32 16, %s20
        %s151 = smul.u32 32, %s19
        %p152 = scmp.lt.s32.totalorder %s151, 255
        %s153 = scalar_select %p152, %s151, 255
        %s154 = smul.addr %s153, 8
        %s155 = scalar_lea.vmem %s1, %s154
        %s156 = smul.u32 32, %s19
        %p157 = scmp.eq.s32.totalorder %s20, 0
        // Predicated region
        $region29: #{tpu_custom_call.1} parent=23 // pred_check
          %p158 = pneg %p157
        $region30: #{tpu_custom_call.1} parent=23 // pred_check_branch
          %160 = sbr.rel (%p158) target = $region32
        $region31: #{tpu_custom_call.1} parent=23 // pred_region
          %vm161 = vcmask 7168
          %162 = vst.msk [vmem:[%s155] sm:$0xff] %vm161, 0.0
          %163 = vst.msk [vmem:[%s155 + $0x8] sm:$0xff] %vm161, 0.0
          %164 = vst.msk [vmem:[%s155 + $0x10] sm:$0xff] %vm161, 0.0
          %165 = vst.msk [vmem:[%s155 + $0x18] sm:$0xff] %vm161, 0.0
          %166 = vst.msk [vmem:[%s155 + $0x20] sm:$0xff] %vm161, 0.0
          %167 = vst.msk [vmem:[%s155 + $0x28] sm:$0xff] %vm161, 0.0
          %168 = vst.msk [vmem:[%s155 + $0x30] sm:$0xff] %vm161, 0.0
          %169 = vst.msk [vmem:[%s155 + $0x38] sm:$0xff] %vm161, 0.0
          %170 = vst.msk [vmem:[%s155 + $0x40] sm:$0xff] %vm161, 0.0
          %171 = vst.msk [vmem:[%s155 + $0x48] sm:$0xff] %vm161, 0.0
          %172 = vst.msk [vmem:[%s155 + $0x50] sm:$0xff] %vm161, 0.0
          %173 = vst.msk [vmem:[%s155 + $0x58] sm:$0xff] %vm161, 0.0
          %174 = vst.msk [vmem:[%s155 + $0x60] sm:$0xff] %vm161, 0.0
          %175 = vst.msk [vmem:[%s155 + $0x68] sm:$0xff] %vm161, 0.0
          %176 = vst.msk [vmem:[%s155 + $0x70] sm:$0xff] %vm161, 0.0
          %177 = vst.msk [vmem:[%s155 + $0x78] sm:$0xff] %vm161, 0.0
          %178 = vst.msk [vmem:[%s155 + $0x80] sm:$0xff] %vm161, 0.0
          %179 = vst.msk [vmem:[%s155 + $0x88] sm:$0xff] %vm161, 0.0
          %180 = vst.msk [vmem:[%s155 + $0x90] sm:$0xff] %vm161, 0.0
          %181 = vst.msk [vmem:[%s155 + $0x98] sm:$0xff] %vm161, 0.0
          %182 = vst.msk [vmem:[%s155 + $0xa0] sm:$0xff] %vm161, 0.0
          %183 = vst.msk [vmem:[%s155 + $0xa8] sm:$0xff] %vm161, 0.0
          %184 = vst.msk [vmem:[%s155 + $0xb0] sm:$0xff] %vm161, 0.0
          %185 = vst.msk [vmem:[%s155 + $0xb8] sm:$0xff] %vm161, 0.0
          %186 = vst.msk [vmem:[%s155 + $0xc0] sm:$0xff] %vm161, 0.0
          %187 = vst.msk [vmem:[%s155 + $0xc8] sm:$0xff] %vm161, 0.0
          %188 = vst.msk [vmem:[%s155 + $0xd0] sm:$0xff] %vm161, 0.0
          %189 = vst.msk [vmem:[%s155 + $0xd8] sm:$0xff] %vm161, 0.0
          %190 = vst.msk [vmem:[%s155 + $0xe0] sm:$0xff] %vm161, 0.0
          %191 = vst.msk [vmem:[%s155 + $0xe8] sm:$0xff] %vm161, 0.0
          %192 = vst.msk [vmem:[%s155 + $0xf0] sm:$0xff] %vm161, 0.0
          %193 = vst.msk [vmem:[%s155 + $0xf8] sm:$0xff] %vm161, 0.0
        $region32: #{tpu_custom_call.1} parent=23 // pred_fallthru
          _
        %v194 = vld [vmem:[%s130] sm:$0xff]
        %v195 = vld [vmem:[%s130 + $0x8] sm:$0xff]
        %v196 = vld [vmem:[%s130 + $0x10] sm:$0xff]
        %v197 = vld [vmem:[%s130 + $0x18] sm:$0xff]
        %v198 = vld [vmem:[%s130 + $0x20] sm:$0xff]
        %v199 = vld [vmem:[%s130 + $0x28] sm:$0xff]
        %v200 = vld [vmem:[%s130 + $0x30] sm:$0xff]
        %v201 = vld [vmem:[%s130 + $0x38] sm:$0xff]
        %v202 = vld [vmem:[%s130 + $0x40] sm:$0xff]
        %v203 = vld [vmem:[%s130 + $0x48] sm:$0xff]
        %v204 = vld [vmem:[%s130 + $0x50] sm:$0xff]
        %v205 = vld [vmem:[%s130 + $0x58] sm:$0xff]
        %v206 = vld [vmem:[%s130 + $0x60] sm:$0xff]
        %v207 = vld [vmem:[%s130 + $0x68] sm:$0xff]
        %v208 = vld [vmem:[%s130 + $0x70] sm:$0xff]
        %v209 = vld [vmem:[%s130 + $0x78] sm:$0xff]
        %v210 = vld [vmem:[%s130 + $0x80] sm:$0xff]
        %v211 = vld [vmem:[%s130 + $0x88] sm:$0xff]
        %v212 = vld [vmem:[%s130 + $0x90] sm:$0xff]
        %v213 = vld [vmem:[%s130 + $0x98] sm:$0xff]
        %v214 = vld [vmem:[%s130 + $0xa0] sm:$0xff]
        %v215 = vld [vmem:[%s130 + $0xa8] sm:$0xff]
        %v216 = vld [vmem:[%s130 + $0xb0] sm:$0xff]
        %v217 = vld [vmem:[%s130 + $0xb8] sm:$0xff]
        %v218 = vld [vmem:[%s130 + $0xc0] sm:$0xff]
        %v219 = vld [vmem:[%s130 + $0xc8] sm:$0xff]
        %v220 = vld [vmem:[%s130 + $0xd0] sm:$0xff]
        %v221 = vld [vmem:[%s130 + $0xd8] sm:$0xff]
        %v222 = vld [vmem:[%s130 + $0xe0] sm:$0xff]
        %v223 = vld [vmem:[%s130 + $0xe8] sm:$0xff]
        %v224 = vld [vmem:[%s130 + $0xf0] sm:$0xff]
        %v225 = vld [vmem:[%s130 + $0xf8] sm:$0xff]
        %v226 = vld [vmem:[%s130 + $0x100] sm:$0xff]
        %v227 = vld [vmem:[%s130 + $0x108] sm:$0xff]
        %v228 = vld [vmem:[%s130 + $0x110] sm:$0xff]
        %v229 = vld [vmem:[%s130 + $0x118] sm:$0xff]
        %v230 = vld [vmem:[%s130 + $0x120] sm:$0xff]
        %v231 = vld [vmem:[%s130 + $0x128] sm:$0xff]
        %v232 = vld [vmem:[%s130 + $0x130] sm:$0xff]
        %v233 = vld [vmem:[%s130 + $0x138] sm:$0xff]
        %v234 = vld [vmem:[%s130 + $0x140] sm:$0xff]
        %v235 = vld [vmem:[%s130 + $0x148] sm:$0xff]
        %v236 = vld [vmem:[%s130 + $0x150] sm:$0xff]
        %v237 = vld [vmem:[%s130 + $0x158] sm:$0xff]
        %v238 = vld [vmem:[%s130 + $0x160] sm:$0xff]
        %v239 = vld [vmem:[%s130 + $0x168] sm:$0xff]
        %v240 = vld [vmem:[%s130 + $0x170] sm:$0xff]
        %v241 = vld [vmem:[%s130 + $0x178] sm:$0xff]
        %v242 = vld [vmem:[%s130 + $0x180] sm:$0xff]
        %v243 = vld [vmem:[%s130 + $0x188] sm:$0xff]
        %v244 = vld [vmem:[%s130 + $0x190] sm:$0xff]
        %v245 = vld [vmem:[%s130 + $0x198] sm:$0xff]
        %v246 = vld [vmem:[%s130 + $0x1a0] sm:$0xff]
        %v247 = vld [vmem:[%s130 + $0x1a8] sm:$0xff]
        %v248 = vld [vmem:[%s130 + $0x1b0] sm:$0xff]
        %v249 = vld [vmem:[%s130 + $0x1b8] sm:$0xff]
        %v250 = vld [vmem:[%s130 + $0x1c0] sm:$0xff]
        %v251 = vld [vmem:[%s130 + $0x1c8] sm:$0xff]
        %v252 = vld [vmem:[%s130 + $0x1d0] sm:$0xff]
        %v253 = vld [vmem:[%s130 + $0x1d8] sm:$0xff]
        %v254 = vld [vmem:[%s130 + $0x1e0] sm:$0xff]
        %v255 = vld [vmem:[%s130 + $0x1e8] sm:$0xff]
        %v256 = vld [vmem:[%s130 + $0x1f0] sm:$0xff]
        %v257 = vld [vmem:[%s130 + $0x1f8] sm:$0xff]
        %v258 = vld [vmem:[%s130 + $0x200] sm:$0xff]
        %v259 = vld [vmem:[%s130 + $0x208] sm:$0xff]
        %v260 = vld [vmem:[%s130 + $0x210] sm:$0xff]
        %v261 = vld [vmem:[%s130 + $0x218] sm:$0xff]
        %v262 = vld [vmem:[%s130 + $0x220] sm:$0xff]
        %v263 = vld [vmem:[%s130 + $0x228] sm:$0xff]
        %v264 = vld [vmem:[%s130 + $0x230] sm:$0xff]
        %v265 = vld [vmem:[%s130 + $0x238] sm:$0xff]
        %v266 = vld [vmem:[%s130 + $0x240] sm:$0xff]
        %v267 = vld [vmem:[%s130 + $0x248] sm:$0xff]
        %v268 = vld [vmem:[%s130 + $0x250] sm:$0xff]
        %v269 = vld [vmem:[%s130 + $0x258] sm:$0xff]
        %v270 = vld [vmem:[%s130 + $0x260] sm:$0xff]
        %v271 = vld [vmem:[%s130 + $0x268] sm:$0xff]
        %v272 = vld [vmem:[%s130 + $0x270] sm:$0xff]
        %v273 = vld [vmem:[%s130 + $0x278] sm:$0xff]
        %v274 = vld [vmem:[%s130 + $0x280] sm:$0xff]
        %v275 = vld [vmem:[%s130 + $0x288] sm:$0xff]
        %v276 = vld [vmem:[%s130 + $0x290] sm:$0xff]
        %v277 = vld [vmem:[%s130 + $0x298] sm:$0xff]
        %v278 = vld [vmem:[%s130 + $0x2a0] sm:$0xff]
        %v279 = vld [vmem:[%s130 + $0x2a8] sm:$0xff]
        %v280 = vld [vmem:[%s130 + $0x2b0] sm:$0xff]
        %v281 = vld [vmem:[%s130 + $0x2b8] sm:$0xff]
        %v282 = vld [vmem:[%s130 + $0x2c0] sm:$0xff]
        %v283 = vld [vmem:[%s130 + $0x2c8] sm:$0xff]
        %v284 = vld [vmem:[%s130 + $0x2d0] sm:$0xff]
        %v285 = vld [vmem:[%s130 + $0x2d8] sm:$0xff]
        %v286 = vld [vmem:[%s130 + $0x2e0] sm:$0xff]
        %v287 = vld [vmem:[%s130 + $0x2e8] sm:$0xff]
        %v288 = vld [vmem:[%s130 + $0x2f0] sm:$0xff]
        %v289 = vld [vmem:[%s130 + $0x2f8] sm:$0xff]
        %v290 = vld [vmem:[%s130 + $0x300] sm:$0xff]
        %v291 = vld [vmem:[%s130 + $0x308] sm:$0xff]
        %v292 = vld [vmem:[%s130 + $0x310] sm:$0xff]
        %v293 = vld [vmem:[%s130 + $0x318] sm:$0xff]
        %v294 = vld [vmem:[%s130 + $0x320] sm:$0xff]
        %v295 = vld [vmem:[%s130 + $0x328] sm:$0xff]
        %v296 = vld [vmem:[%s130 + $0x330] sm:$0xff]
        %v297 = vld [vmem:[%s130 + $0x338] sm:$0xff]
        %v298 = vld [vmem:[%s130 + $0x340] sm:$0xff]
        %v299 = vld [vmem:[%s130 + $0x348] sm:$0xff]
        %v300 = vld [vmem:[%s130 + $0x350] sm:$0xff]
        %v301 = vld [vmem:[%s130 + $0x358] sm:$0xff]
        %v302 = vld [vmem:[%s130 + $0x360] sm:$0xff]
        %v303 = vld [vmem:[%s130 + $0x368] sm:$0xff]
        %v304 = vld [vmem:[%s130 + $0x370] sm:$0xff]
        %v305 = vld [vmem:[%s130 + $0x378] sm:$0xff]
        %v306 = vld [vmem:[%s130 + $0x380] sm:$0xff]
        %v307 = vld [vmem:[%s130 + $0x388] sm:$0xff]
        %v308 = vld [vmem:[%s130 + $0x390] sm:$0xff]
        %v309 = vld [vmem:[%s130 + $0x398] sm:$0xff]
        %v310 = vld [vmem:[%s130 + $0x3a0] sm:$0xff]
        %v311 = vld [vmem:[%s130 + $0x3a8] sm:$0xff]
        %v312 = vld [vmem:[%s130 + $0x3b0] sm:$0xff]
        %v313 = vld [vmem:[%s130 + $0x3b8] sm:$0xff]
        %v314 = vld [vmem:[%s130 + $0x3c0] sm:$0xff]
        %v315 = vld [vmem:[%s130 + $0x3c8] sm:$0xff]
        %v316 = vld [vmem:[%s130 + $0x3d0] sm:$0xff]
        %v317 = vld [vmem:[%s130 + $0x3d8] sm:$0xff]
        %v318 = vld [vmem:[%s130 + $0x3e0] sm:$0xff]
        %v319 = vld [vmem:[%s130 + $0x3e8] sm:$0xff]
        %v320 = vld [vmem:[%s130 + $0x3f0] sm:$0xff]
        %v321 = vld [vmem:[%s130 + $0x3f8] sm:$0xff]
        %v322 = vld [vmem:[%s130 + $0x400] sm:$0xff]
        %v323 = vld [vmem:[%s130 + $0x408] sm:$0xff]
        %v324 = vld [vmem:[%s130 + $0x410] sm:$0xff]
        %v325 = vld [vmem:[%s130 + $0x418] sm:$0xff]
        %v326 = vld [vmem:[%s130 + $0x420] sm:$0xff]
        %v327 = vld [vmem:[%s130 + $0x428] sm:$0xff]
        %v328 = vld [vmem:[%s130 + $0x430] sm:$0xff]
        %v329 = vld [vmem:[%s130 + $0x438] sm:$0xff]
        %v330 = vld [vmem:[%s130 + $0x440] sm:$0xff]
        %v331 = vld [vmem:[%s130 + $0x448] sm:$0xff]
        %v332 = vld [vmem:[%s130 + $0x450] sm:$0xff]
        %v333 = vld [vmem:[%s130 + $0x458] sm:$0xff]
        %v334 = vld [vmem:[%s130 + $0x460] sm:$0xff]
        %v335 = vld [vmem:[%s130 + $0x468] sm:$0xff]
        %v336 = vld [vmem:[%s130 + $0x470] sm:$0xff]
        %v337 = vld [vmem:[%s130 + $0x478] sm:$0xff]
        %v338 = vld [vmem:[%s130 + $0x480] sm:$0xff]
        %v339 = vld [vmem:[%s130 + $0x488] sm:$0xff]
        %v340 = vld [vmem:[%s130 + $0x490] sm:$0xff]
        %v341 = vld [vmem:[%s130 + $0x498] sm:$0xff]
        %v342 = vld [vmem:[%s130 + $0x4a0] sm:$0xff]
        %v343 = vld [vmem:[%s130 + $0x4a8] sm:$0xff]
        %v344 = vld [vmem:[%s130 + $0x4b0] sm:$0xff]
        %v345 = vld [vmem:[%s130 + $0x4b8] sm:$0xff]
        %v346 = vld [vmem:[%s130 + $0x4c0] sm:$0xff]
        %v347 = vld [vmem:[%s130 + $0x4c8] sm:$0xff]
        %v348 = vld [vmem:[%s130 + $0x4d0] sm:$0xff]
        %v349 = vld [vmem:[%s130 + $0x4d8] sm:$0xff]
        %v350 = vld [vmem:[%s130 + $0x4e0] sm:$0xff]
        %v351 = vld [vmem:[%s130 + $0x4e8] sm:$0xff]
        %v352 = vld [vmem:[%s130 + $0x4f0] sm:$0xff]
        %v353 = vld [vmem:[%s130 + $0x4f8] sm:$0xff]
        %v354 = vld [vmem:[%s130 + $0x500] sm:$0xff]
        %v355 = vld [vmem:[%s130 + $0x508] sm:$0xff]
        %v356 = vld [vmem:[%s130 + $0x510] sm:$0xff]
        %v357 = vld [vmem:[%s130 + $0x518] sm:$0xff]
        %v358 = vld [vmem:[%s130 + $0x520] sm:$0xff]
        %v359 = vld [vmem:[%s130 + $0x528] sm:$0xff]
        %v360 = vld [vmem:[%s130 + $0x530] sm:$0xff]
        %v361 = vld [vmem:[%s130 + $0x538] sm:$0xff]
        %v362 = vld [vmem:[%s130 + $0x540] sm:$0xff]
        %v363 = vld [vmem:[%s130 + $0x548] sm:$0xff]
        %v364 = vld [vmem:[%s130 + $0x550] sm:$0xff]
        %v365 = vld [vmem:[%s130 + $0x558] sm:$0xff]
        %v366 = vld [vmem:[%s130 + $0x560] sm:$0xff]
        %v367 = vld [vmem:[%s130 + $0x568] sm:$0xff]
        %v368 = vld [vmem:[%s130 + $0x570] sm:$0xff]
        %v369 = vld [vmem:[%s130 + $0x578] sm:$0xff]
        %v370 = vld [vmem:[%s130 + $0x580] sm:$0xff]
        %v371 = vld [vmem:[%s130 + $0x588] sm:$0xff]
        %v372 = vld [vmem:[%s130 + $0x590] sm:$0xff]
        %v373 = vld [vmem:[%s130 + $0x598] sm:$0xff]
        %v374 = vld [vmem:[%s130 + $0x5a0] sm:$0xff]
        %v375 = vld [vmem:[%s130 + $0x5a8] sm:$0xff]
        %v376 = vld [vmem:[%s130 + $0x5b0] sm:$0xff]
        %v377 = vld [vmem:[%s130 + $0x5b8] sm:$0xff]
        %v378 = vld [vmem:[%s130 + $0x5c0] sm:$0xff]
        %v379 = vld [vmem:[%s130 + $0x5c8] sm:$0xff]
        %v380 = vld [vmem:[%s130 + $0x5d0] sm:$0xff]
        %v381 = vld [vmem:[%s130 + $0x5d8] sm:$0xff]
        %v382 = vld [vmem:[%s130 + $0x5e0] sm:$0xff]
        %v383 = vld [vmem:[%s130 + $0x5e8] sm:$0xff]
        %v384 = vld [vmem:[%s130 + $0x5f0] sm:$0xff]
        %v385 = vld [vmem:[%s130 + $0x5f8] sm:$0xff]
        %v386 = vld [vmem:[%s130 + $0x600] sm:$0xff]
        %v387 = vld [vmem:[%s130 + $0x608] sm:$0xff]
        %v388 = vld [vmem:[%s130 + $0x610] sm:$0xff]
        %v389 = vld [vmem:[%s130 + $0x618] sm:$0xff]
        %v390 = vld [vmem:[%s130 + $0x620] sm:$0xff]
        %v391 = vld [vmem:[%s130 + $0x628] sm:$0xff]
        %v392 = vld [vmem:[%s130 + $0x630] sm:$0xff]
        %v393 = vld [vmem:[%s130 + $0x638] sm:$0xff]
        %v394 = vld [vmem:[%s130 + $0x640] sm:$0xff]
        %v395 = vld [vmem:[%s130 + $0x648] sm:$0xff]
        %v396 = vld [vmem:[%s130 + $0x650] sm:$0xff]
        %v397 = vld [vmem:[%s130 + $0x658] sm:$0xff]
        %v398 = vld [vmem:[%s130 + $0x660] sm:$0xff]
        %v399 = vld [vmem:[%s130 + $0x668] sm:$0xff]
        %v400 = vld [vmem:[%s130 + $0x670] sm:$0xff]
        %v401 = vld [vmem:[%s130 + $0x678] sm:$0xff]
        %v402 = vld [vmem:[%s130 + $0x680] sm:$0xff]
        %v403 = vld [vmem:[%s130 + $0x688] sm:$0xff]
        %v404 = vld [vmem:[%s130 + $0x690] sm:$0xff]
        %v405 = vld [vmem:[%s130 + $0x698] sm:$0xff]
        %v406 = vld [vmem:[%s130 + $0x6a0] sm:$0xff]
        %v407 = vld [vmem:[%s130 + $0x6a8] sm:$0xff]
        %v408 = vld [vmem:[%s130 + $0x6b0] sm:$0xff]
        %v409 = vld [vmem:[%s130 + $0x6b8] sm:$0xff]
        %v410 = vld [vmem:[%s130 + $0x6c0] sm:$0xff]
        %v411 = vld [vmem:[%s130 + $0x6c8] sm:$0xff]
        %v412 = vld [vmem:[%s130 + $0x6d0] sm:$0xff]
        %v413 = vld [vmem:[%s130 + $0x6d8] sm:$0xff]
        %v414 = vld [vmem:[%s130 + $0x6e0] sm:$0xff]
        %v415 = vld [vmem:[%s130 + $0x6e8] sm:$0xff]
        %v416 = vld [vmem:[%s130 + $0x6f0] sm:$0xff]
        %v417 = vld [vmem:[%s130 + $0x6f8] sm:$0xff]
        %v418 = vld [vmem:[%s130 + $0x700] sm:$0xff]
        %v419 = vld [vmem:[%s130 + $0x708] sm:$0xff]
        %v420 = vld [vmem:[%s130 + $0x710] sm:$0xff]
        %v421 = vld [vmem:[%s130 + $0x718] sm:$0xff]
        %v422 = vld [vmem:[%s130 + $0x720] sm:$0xff]
        %v423 = vld [vmem:[%s130 + $0x728] sm:$0xff]
        %v424 = vld [vmem:[%s130 + $0x730] sm:$0xff]
        %v425 = vld [vmem:[%s130 + $0x738] sm:$0xff]
        %v426 = vld [vmem:[%s130 + $0x740] sm:$0xff]
        %v427 = vld [vmem:[%s130 + $0x748] sm:$0xff]
        %v428 = vld [vmem:[%s130 + $0x750] sm:$0xff]
        %v429 = vld [vmem:[%s130 + $0x758] sm:$0xff]
        %v430 = vld [vmem:[%s130 + $0x760] sm:$0xff]
        %v431 = vld [vmem:[%s130 + $0x768] sm:$0xff]
        %v432 = vld [vmem:[%s130 + $0x770] sm:$0xff]
        %v433 = vld [vmem:[%s130 + $0x778] sm:$0xff]
        %v434 = vld [vmem:[%s130 + $0x780] sm:$0xff]
        %v435 = vld [vmem:[%s130 + $0x788] sm:$0xff]
        %v436 = vld [vmem:[%s130 + $0x790] sm:$0xff]
        %v437 = vld [vmem:[%s130 + $0x798] sm:$0xff]
        %v438 = vld [vmem:[%s130 + $0x7a0] sm:$0xff]
        %v439 = vld [vmem:[%s130 + $0x7a8] sm:$0xff]
        %v440 = vld [vmem:[%s130 + $0x7b0] sm:$0xff]
        %v441 = vld [vmem:[%s130 + $0x7b8] sm:$0xff]
        %v442 = vld [vmem:[%s130 + $0x7c0] sm:$0xff]
        %v443 = vld [vmem:[%s130 + $0x7c8] sm:$0xff]
        %v444 = vld [vmem:[%s130 + $0x7d0] sm:$0xff]
        %v445 = vld [vmem:[%s130 + $0x7d8] sm:$0xff]
        %v446 = vld [vmem:[%s130 + $0x7e0] sm:$0xff]
        %v447 = vld [vmem:[%s130 + $0x7e8] sm:$0xff]
        %v448 = vld [vmem:[%s130 + $0x7f0] sm:$0xff]
        %v449 = vld [vmem:[%s130 + $0x7f8] sm:$0xff]
        %v450 = vld [vmem:[%s130 + $0x800] sm:$0xff]
        %v451 = vld [vmem:[%s130 + $0x808] sm:$0xff]
        %v452 = vld [vmem:[%s130 + $0x810] sm:$0xff]
        %v453 = vld [vmem:[%s130 + $0x818] sm:$0xff]
        %v454 = vld [vmem:[%s130 + $0x820] sm:$0xff]
        %v455 = vld [vmem:[%s130 + $0x828] sm:$0xff]
        %v456 = vld [vmem:[%s130 + $0x830] sm:$0xff]
        %v457 = vld [vmem:[%s130 + $0x838] sm:$0xff]
        %v458 = vld [vmem:[%s130 + $0x840] sm:$0xff]
        %v459 = vld [vmem:[%s130 + $0x848] sm:$0xff]
        %v460 = vld [vmem:[%s130 + $0x850] sm:$0xff]
        %v461 = vld [vmem:[%s130 + $0x858] sm:$0xff]
        %v462 = vld [vmem:[%s130 + $0x860] sm:$0xff]
        %v463 = vld [vmem:[%s130 + $0x868] sm:$0xff]
        %v464 = vld [vmem:[%s130 + $0x870] sm:$0xff]
        %v465 = vld [vmem:[%s130 + $0x878] sm:$0xff]
        %v466 = vld [vmem:[%s130 + $0x880] sm:$0xff]
        %v467 = vld [vmem:[%s130 + $0x888] sm:$0xff]
        %v468 = vld [vmem:[%s130 + $0x890] sm:$0xff]
        %v469 = vld [vmem:[%s130 + $0x898] sm:$0xff]
        %v470 = vld [vmem:[%s130 + $0x8a0] sm:$0xff]
        %v471 = vld [vmem:[%s130 + $0x8a8] sm:$0xff]
        %v472 = vld [vmem:[%s130 + $0x8b0] sm:$0xff]
        %v473 = vld [vmem:[%s130 + $0x8b8] sm:$0xff]
        %v474 = vld [vmem:[%s130 + $0x8c0] sm:$0xff]
        %v475 = vld [vmem:[%s130 + $0x8c8] sm:$0xff]
        %v476 = vld [vmem:[%s130 + $0x8d0] sm:$0xff]
        %v477 = vld [vmem:[%s130 + $0x8d8] sm:$0xff]
        %v478 = vld [vmem:[%s130 + $0x8e0] sm:$0xff]
        %v479 = vld [vmem:[%s130 + $0x8e8] sm:$0xff]
        %v480 = vld [vmem:[%s130 + $0x8f0] sm:$0xff]
        %v481 = vld [vmem:[%s130 + $0x8f8] sm:$0xff]
        %v482 = vld [vmem:[%s130 + $0x900] sm:$0xff]
        %v483 = vld [vmem:[%s130 + $0x908] sm:$0xff]
        %v484 = vld [vmem:[%s130 + $0x910] sm:$0xff]
        %v485 = vld [vmem:[%s130 + $0x918] sm:$0xff]
        %v486 = vld [vmem:[%s130 + $0x920] sm:$0xff]
        %v487 = vld [vmem:[%s130 + $0x928] sm:$0xff]
        %v488 = vld [vmem:[%s130 + $0x930] sm:$0xff]
        %v489 = vld [vmem:[%s130 + $0x938] sm:$0xff]
        %v490 = vld [vmem:[%s130 + $0x940] sm:$0xff]
        %v491 = vld [vmem:[%s130 + $0x948] sm:$0xff]
        %v492 = vld [vmem:[%s130 + $0x950] sm:$0xff]
        %v493 = vld [vmem:[%s130 + $0x958] sm:$0xff]
        %v494 = vld [vmem:[%s130 + $0x960] sm:$0xff]
        %v495 = vld [vmem:[%s130 + $0x968] sm:$0xff]
        %v496 = vld [vmem:[%s130 + $0x970] sm:$0xff]
        %v497 = vld [vmem:[%s130 + $0x978] sm:$0xff]
        %v498 = vld [vmem:[%s130 + $0x980] sm:$0xff]
        %v499 = vld [vmem:[%s130 + $0x988] sm:$0xff]
        %v500 = vld [vmem:[%s130 + $0x990] sm:$0xff]
        %v501 = vld [vmem:[%s130 + $0x998] sm:$0xff]
        %v502 = vld [vmem:[%s130 + $0x9a0] sm:$0xff]
        %v503 = vld [vmem:[%s130 + $0x9a8] sm:$0xff]
        %v504 = vld [vmem:[%s130 + $0x9b0] sm:$0xff]
        %v505 = vld [vmem:[%s130 + $0x9b8] sm:$0xff]
        %v506 = vld [vmem:[%s130 + $0x9c0] sm:$0xff]
        %v507 = vld [vmem:[%s130 + $0x9c8] sm:$0xff]
        %v508 = vld [vmem:[%s130 + $0x9d0] sm:$0xff]
        %v509 = vld [vmem:[%s130 + $0x9d8] sm:$0xff]
        %v510 = vld [vmem:[%s130 + $0x9e0] sm:$0xff]
        %v511 = vld [vmem:[%s130 + $0x9e8] sm:$0xff]
        %v512 = vld [vmem:[%s130 + $0x9f0] sm:$0xff]
        %v513 = vld [vmem:[%s130 + $0x9f8] sm:$0xff]
        %v514 = vld [vmem:[%s130 + $0xa00] sm:$0xff]
        %v515 = vld [vmem:[%s130 + $0xa08] sm:$0xff]
        %v516 = vld [vmem:[%s130 + $0xa10] sm:$0xff]
        %v517 = vld [vmem:[%s130 + $0xa18] sm:$0xff]
        %v518 = vld [vmem:[%s130 + $0xa20] sm:$0xff]
        %v519 = vld [vmem:[%s130 + $0xa28] sm:$0xff]
        %v520 = vld [vmem:[%s130 + $0xa30] sm:$0xff]
        %v521 = vld [vmem:[%s130 + $0xa38] sm:$0xff]
        %v522 = vld [vmem:[%s130 + $0xa40] sm:$0xff]
        %v523 = vld [vmem:[%s130 + $0xa48] sm:$0xff]
        %v524 = vld [vmem:[%s130 + $0xa50] sm:$0xff]
        %v525 = vld [vmem:[%s130 + $0xa58] sm:$0xff]
        %v526 = vld [vmem:[%s130 + $0xa60] sm:$0xff]
        %v527 = vld [vmem:[%s130 + $0xa68] sm:$0xff]
        %v528 = vld [vmem:[%s130 + $0xa70] sm:$0xff]
        %v529 = vld [vmem:[%s130 + $0xa78] sm:$0xff]
        %v530 = vld [vmem:[%s130 + $0xa80] sm:$0xff]
        %v531 = vld [vmem:[%s130 + $0xa88] sm:$0xff]
        %v532 = vld [vmem:[%s130 + $0xa90] sm:$0xff]
        %v533 = vld [vmem:[%s130 + $0xa98] sm:$0xff]
        %v534 = vld [vmem:[%s130 + $0xaa0] sm:$0xff]
        %v535 = vld [vmem:[%s130 + $0xaa8] sm:$0xff]
        %v536 = vld [vmem:[%s130 + $0xab0] sm:$0xff]
        %v537 = vld [vmem:[%s130 + $0xab8] sm:$0xff]
        %v538 = vld [vmem:[%s130 + $0xac0] sm:$0xff]
        %v539 = vld [vmem:[%s130 + $0xac8] sm:$0xff]
        %v540 = vld [vmem:[%s130 + $0xad0] sm:$0xff]
        %v541 = vld [vmem:[%s130 + $0xad8] sm:$0xff]
        %v542 = vld [vmem:[%s130 + $0xae0] sm:$0xff]
        %v543 = vld [vmem:[%s130 + $0xae8] sm:$0xff]
        %v544 = vld [vmem:[%s130 + $0xaf0] sm:$0xff]
        %v545 = vld [vmem:[%s130 + $0xaf8] sm:$0xff]
        %v546 = vld [vmem:[%s130 + $0xb00] sm:$0xff]
        %v547 = vld [vmem:[%s130 + $0xb08] sm:$0xff]
        %v548 = vld [vmem:[%s130 + $0xb10] sm:$0xff]
        %v549 = vld [vmem:[%s130 + $0xb18] sm:$0xff]
        %v550 = vld [vmem:[%s130 + $0xb20] sm:$0xff]
        %v551 = vld [vmem:[%s130 + $0xb28] sm:$0xff]
        %v552 = vld [vmem:[%s130 + $0xb30] sm:$0xff]
        %v553 = vld [vmem:[%s130 + $0xb38] sm:$0xff]
        %v554 = vld [vmem:[%s130 + $0xb40] sm:$0xff]
        %v555 = vld [vmem:[%s130 + $0xb48] sm:$0xff]
        %v556 = vld [vmem:[%s130 + $0xb50] sm:$0xff]
        %v557 = vld [vmem:[%s130 + $0xb58] sm:$0xff]
        %v558 = vld [vmem:[%s130 + $0xb60] sm:$0xff]
        %v559 = vld [vmem:[%s130 + $0xb68] sm:$0xff]
        %v560 = vld [vmem:[%s130 + $0xb70] sm:$0xff]
        %v561 = vld [vmem:[%s130 + $0xb78] sm:$0xff]
        %v562 = vld [vmem:[%s130 + $0xb80] sm:$0xff]
        %v563 = vld [vmem:[%s130 + $0xb88] sm:$0xff]
        %v564 = vld [vmem:[%s130 + $0xb90] sm:$0xff]
        %v565 = vld [vmem:[%s130 + $0xb98] sm:$0xff]
        %v566 = vld [vmem:[%s130 + $0xba0] sm:$0xff]
        %v567 = vld [vmem:[%s130 + $0xba8] sm:$0xff]
        %v568 = vld [vmem:[%s130 + $0xbb0] sm:$0xff]
        %v569 = vld [vmem:[%s130 + $0xbb8] sm:$0xff]
        %v570 = vld [vmem:[%s130 + $0xbc0] sm:$0xff]
        %v571 = vld [vmem:[%s130 + $0xbc8] sm:$0xff]
        %v572 = vld [vmem:[%s130 + $0xbd0] sm:$0xff]
        %v573 = vld [vmem:[%s130 + $0xbd8] sm:$0xff]
        %v574 = vld [vmem:[%s130 + $0xbe0] sm:$0xff]
        %v575 = vld [vmem:[%s130 + $0xbe8] sm:$0xff]
        %v576 = vld [vmem:[%s130 + $0xbf0] sm:$0xff]
        %v577 = vld [vmem:[%s130 + $0xbf8] sm:$0xff]
        %v578 = vld [vmem:[%s130 + $0xc00] sm:$0xff]
        %v579 = vld [vmem:[%s130 + $0xc08] sm:$0xff]
        %v580 = vld [vmem:[%s130 + $0xc10] sm:$0xff]
        %v581 = vld [vmem:[%s130 + $0xc18] sm:$0xff]
        %v582 = vld [vmem:[%s130 + $0xc20] sm:$0xff]
        %v583 = vld [vmem:[%s130 + $0xc28] sm:$0xff]
        %v584 = vld [vmem:[%s130 + $0xc30] sm:$0xff]
        %v585 = vld [vmem:[%s130 + $0xc38] sm:$0xff]
        %v586 = vld [vmem:[%s130 + $0xc40] sm:$0xff]
        %v587 = vld [vmem:[%s130 + $0xc48] sm:$0xff]
        %v588 = vld [vmem:[%s130 + $0xc50] sm:$0xff]
        %v589 = vld [vmem:[%s130 + $0xc58] sm:$0xff]
        %v590 = vld [vmem:[%s130 + $0xc60] sm:$0xff]
        %v591 = vld [vmem:[%s130 + $0xc68] sm:$0xff]
        %v592 = vld [vmem:[%s130 + $0xc70] sm:$0xff]
        %v593 = vld [vmem:[%s130 + $0xc78] sm:$0xff]
        %v594 = vld [vmem:[%s130 + $0xc80] sm:$0xff]
        %v595 = vld [vmem:[%s130 + $0xc88] sm:$0xff]
        %v596 = vld [vmem:[%s130 + $0xc90] sm:$0xff]
        %v597 = vld [vmem:[%s130 + $0xc98] sm:$0xff]
        %v598 = vld [vmem:[%s130 + $0xca0] sm:$0xff]
        %v599 = vld [vmem:[%s130 + $0xca8] sm:$0xff]
        %v600 = vld [vmem:[%s130 + $0xcb0] sm:$0xff]
        %v601 = vld [vmem:[%s130 + $0xcb8] sm:$0xff]
        %v602 = vld [vmem:[%s130 + $0xcc0] sm:$0xff]
        %v603 = vld [vmem:[%s130 + $0xcc8] sm:$0xff]
        %v604 = vld [vmem:[%s130 + $0xcd0] sm:$0xff]
        %v605 = vld [vmem:[%s130 + $0xcd8] sm:$0xff]
        %v606 = vld [vmem:[%s130 + $0xce0] sm:$0xff]
        %v607 = vld [vmem:[%s130 + $0xce8] sm:$0xff]
        %v608 = vld [vmem:[%s130 + $0xcf0] sm:$0xff]
        %v609 = vld [vmem:[%s130 + $0xcf8] sm:$0xff]
        %v610 = vld [vmem:[%s130 + $0xd00] sm:$0xff]
        %v611 = vld [vmem:[%s130 + $0xd08] sm:$0xff]
        %v612 = vld [vmem:[%s130 + $0xd10] sm:$0xff]
        %v613 = vld [vmem:[%s130 + $0xd18] sm:$0xff]
        %v614 = vld [vmem:[%s130 + $0xd20] sm:$0xff]
        %v615 = vld [vmem:[%s130 + $0xd28] sm:$0xff]
        %v616 = vld [vmem:[%s130 + $0xd30] sm:$0xff]
        %v617 = vld [vmem:[%s130 + $0xd38] sm:$0xff]
        %v618 = vld [vmem:[%s130 + $0xd40] sm:$0xff]
        %v619 = vld [vmem:[%s130 + $0xd48] sm:$0xff]
        %v620 = vld [vmem:[%s130 + $0xd50] sm:$0xff]
        %v621 = vld [vmem:[%s130 + $0xd58] sm:$0xff]
        %v622 = vld [vmem:[%s130 + $0xd60] sm:$0xff]
        %v623 = vld [vmem:[%s130 + $0xd68] sm:$0xff]
        %v624 = vld [vmem:[%s130 + $0xd70] sm:$0xff]
        %v625 = vld [vmem:[%s130 + $0xd78] sm:$0xff]
        %v626 = vld [vmem:[%s130 + $0xd80] sm:$0xff]
        %v627 = vld [vmem:[%s130 + $0xd88] sm:$0xff]
        %v628 = vld [vmem:[%s130 + $0xd90] sm:$0xff]
        %v629 = vld [vmem:[%s130 + $0xd98] sm:$0xff]
        %v630 = vld [vmem:[%s130 + $0xda0] sm:$0xff]
        %v631 = vld [vmem:[%s130 + $0xda8] sm:$0xff]
        %v632 = vld [vmem:[%s130 + $0xdb0] sm:$0xff]
        %v633 = vld [vmem:[%s130 + $0xdb8] sm:$0xff]
        %v634 = vld [vmem:[%s130 + $0xdc0] sm:$0xff]
        %v635 = vld [vmem:[%s130 + $0xdc8] sm:$0xff]
        %v636 = vld [vmem:[%s130 + $0xdd0] sm:$0xff]
        %v637 = vld [vmem:[%s130 + $0xdd8] sm:$0xff]
        %v638 = vld [vmem:[%s130 + $0xde0] sm:$0xff]
        %v639 = vld [vmem:[%s130 + $0xde8] sm:$0xff]
        %v640 = vld [vmem:[%s130 + $0xdf0] sm:$0xff]
        %v641 = vld [vmem:[%s130 + $0xdf8] sm:$0xff]
        %v642 = vld [vmem:[%s130 + $0xe00] sm:$0xff]
        %v643 = vld [vmem:[%s130 + $0xe08] sm:$0xff]
        %v644 = vld [vmem:[%s130 + $0xe10] sm:$0xff]
        %v645 = vld [vmem:[%s130 + $0xe18] sm:$0xff]
        %v646 = vld [vmem:[%s130 + $0xe20] sm:$0xff]
        %v647 = vld [vmem:[%s130 + $0xe28] sm:$0xff]
        %v648 = vld [vmem:[%s130 + $0xe30] sm:$0xff]
        %v649 = vld [vmem:[%s130 + $0xe38] sm:$0xff]
        %v650 = vld [vmem:[%s130 + $0xe40] sm:$0xff]
        %v651 = vld [vmem:[%s130 + $0xe48] sm:$0xff]
        %v652 = vld [vmem:[%s130 + $0xe50] sm:$0xff]
        %v653 = vld [vmem:[%s130 + $0xe58] sm:$0xff]
        %v654 = vld [vmem:[%s130 + $0xe60] sm:$0xff]
        %v655 = vld [vmem:[%s130 + $0xe68] sm:$0xff]
        %v656 = vld [vmem:[%s130 + $0xe70] sm:$0xff]
        %v657 = vld [vmem:[%s130 + $0xe78] sm:$0xff]
        %v658 = vld [vmem:[%s130 + $0xe80] sm:$0xff]
        %v659 = vld [vmem:[%s130 + $0xe88] sm:$0xff]
        %v660 = vld [vmem:[%s130 + $0xe90] sm:$0xff]
        %v661 = vld [vmem:[%s130 + $0xe98] sm:$0xff]
        %v662 = vld [vmem:[%s130 + $0xea0] sm:$0xff]
        %v663 = vld [vmem:[%s130 + $0xea8] sm:$0xff]
        %v664 = vld [vmem:[%s130 + $0xeb0] sm:$0xff]
        %v665 = vld [vmem:[%s130 + $0xeb8] sm:$0xff]
        %v666 = vld [vmem:[%s130 + $0xec0] sm:$0xff]
        %v667 = vld [vmem:[%s130 + $0xec8] sm:$0xff]
        %v668 = vld [vmem:[%s130 + $0xed0] sm:$0xff]
        %v669 = vld [vmem:[%s130 + $0xed8] sm:$0xff]
        %v670 = vld [vmem:[%s130 + $0xee0] sm:$0xff]
        %v671 = vld [vmem:[%s130 + $0xee8] sm:$0xff]
        %v672 = vld [vmem:[%s130 + $0xef0] sm:$0xff]
        %v673 = vld [vmem:[%s130 + $0xef8] sm:$0xff]
        %v674 = vld [vmem:[%s130 + $0xf00] sm:$0xff]
        %v675 = vld [vmem:[%s130 + $0xf08] sm:$0xff]
        %v676 = vld [vmem:[%s130 + $0xf10] sm:$0xff]
        %v677 = vld [vmem:[%s130 + $0xf18] sm:$0xff]
        %v678 = vld [vmem:[%s130 + $0xf20] sm:$0xff]
        %v679 = vld [vmem:[%s130 + $0xf28] sm:$0xff]
        %v680 = vld [vmem:[%s130 + $0xf30] sm:$0xff]
        %v681 = vld [vmem:[%s130 + $0xf38] sm:$0xff]
        %v682 = vld [vmem:[%s130 + $0xf40] sm:$0xff]
        %v683 = vld [vmem:[%s130 + $0xf48] sm:$0xff]
        %v684 = vld [vmem:[%s130 + $0xf50] sm:$0xff]
        %v685 = vld [vmem:[%s130 + $0xf58] sm:$0xff]
        %v686 = vld [vmem:[%s130 + $0xf60] sm:$0xff]
        %v687 = vld [vmem:[%s130 + $0xf68] sm:$0xff]
        %v688 = vld [vmem:[%s130 + $0xf70] sm:$0xff]
        %v689 = vld [vmem:[%s130 + $0xf78] sm:$0xff]
        %v690 = vld [vmem:[%s130 + $0xf80] sm:$0xff]
        %v691 = vld [vmem:[%s130 + $0xf88] sm:$0xff]
        %v692 = vld [vmem:[%s130 + $0xf90] sm:$0xff]
        %v693 = vld [vmem:[%s130 + $0xf98] sm:$0xff]
        %v694 = vld [vmem:[%s130 + $0xfa0] sm:$0xff]
        %v695 = vld [vmem:[%s130 + $0xfa8] sm:$0xff]
        %v696 = vld [vmem:[%s130 + $0xfb0] sm:$0xff]
        %v697 = vld [vmem:[%s130 + $0xfb8] sm:$0xff]
        %v698 = vld [vmem:[%s130 + $0xfc0] sm:$0xff]
        %v699 = vld [vmem:[%s130 + $0xfc8] sm:$0xff]
        %v700 = vld [vmem:[%s130 + $0xfd0] sm:$0xff]
        %v701 = vld [vmem:[%s130 + $0xfd8] sm:$0xff]
        %v702 = vld [vmem:[%s130 + $0xfe0] sm:$0xff]
        %v703 = vld [vmem:[%s130 + $0xfe8] sm:$0xff]
        %v704 = vld [vmem:[%s130 + $0xff0] sm:$0xff]
        %v705 = vld [vmem:[%s130 + $0xff8] sm:$0xff]
        %v706 = vld [vmem:[%s155] sm:$0xff]
        %v707 = vld [vmem:[%s155 + $0x8] sm:$0xff]
        %v708 = vld [vmem:[%s155 + $0x10] sm:$0xff]
        %v709 = vld [vmem:[%s155 + $0x18] sm:$0xff]
        %v710 = vld [vmem:[%s155 + $0x20] sm:$0xff]
        %v711 = vld [vmem:[%s155 + $0x28] sm:$0xff]
        %v712 = vld [vmem:[%s155 + $0x30] sm:$0xff]
        %v713 = vld [vmem:[%s155 + $0x38] sm:$0xff]
        %v714 = vld [vmem:[%s155 + $0x40] sm:$0xff]
        %v715 = vld [vmem:[%s155 + $0x48] sm:$0xff]
        %v716 = vld [vmem:[%s155 + $0x50] sm:$0xff]
        %v717 = vld [vmem:[%s155 + $0x58] sm:$0xff]
        %v718 = vld [vmem:[%s155 + $0x60] sm:$0xff]
        %v719 = vld [vmem:[%s155 + $0x68] sm:$0xff]
        %v720 = vld [vmem:[%s155 + $0x70] sm:$0xff]
        %v721 = vld [vmem:[%s155 + $0x78] sm:$0xff]
        %v722 = vld [vmem:[%s155 + $0x80] sm:$0xff]
        %v723 = vld [vmem:[%s155 + $0x88] sm:$0xff]
        %v724 = vld [vmem:[%s155 + $0x90] sm:$0xff]
        %v725 = vld [vmem:[%s155 + $0x98] sm:$0xff]
        %v726 = vld [vmem:[%s155 + $0xa0] sm:$0xff]
        %v727 = vld [vmem:[%s155 + $0xa8] sm:$0xff]
        %v728 = vld [vmem:[%s155 + $0xb0] sm:$0xff]
        %v729 = vld [vmem:[%s155 + $0xb8] sm:$0xff]
        %v730 = vld [vmem:[%s155 + $0xc0] sm:$0xff]
        %v731 = vld [vmem:[%s155 + $0xc8] sm:$0xff]
        %v732 = vld [vmem:[%s155 + $0xd0] sm:$0xff]
        %v733 = vld [vmem:[%s155 + $0xd8] sm:$0xff]
        %v734 = vld [vmem:[%s155 + $0xe0] sm:$0xff]
        %v735 = vld [vmem:[%s155 + $0xe8] sm:$0xff]
        %v736 = vld [vmem:[%s155 + $0xf0] sm:$0xff]
        %v737 = vld [vmem:[%s155 + $0xf8] sm:$0xff]
        %v738 = vadd.f32 %v194, %v195
        %v739 = vadd.f32 %v738, %v196
        %v740 = vadd.f32 %v739, %v197
        %v741 = vadd.f32 %v740, %v198
        %v742 = vadd.f32 %v741, %v199
        %v743 = vadd.f32 %v742, %v200
        %v744 = vadd.f32 %v743, %v201
        %v745 = vadd.f32 %v744, %v202
        %v746 = vadd.f32 %v745, %v203
        %v747 = vadd.f32 %v746, %v204
        %v748 = vadd.f32 %v747, %v205
        %v749 = vadd.f32 %v748, %v206
        %v750 = vadd.f32 %v749, %v207
        %v751 = vadd.f32 %v750, %v208
        %v752 = vadd.f32 %v751, %v209
        %753 = vadd.xlane.f32.xlu0 %v752
        %v754 = vpop.xlane.xlu0 %753
        %v755 = vadd.f32 %v210, %v211
        %v756 = vadd.f32 %v755, %v212
        %v757 = vadd.f32 %v756, %v213
        %v758 = vadd.f32 %v757, %v214
        %v759 = vadd.f32 %v758, %v215
        %v760 = vadd.f32 %v759, %v216
        %v761 = vadd.f32 %v760, %v217
        %v762 = vadd.f32 %v761, %v218
        %v763 = vadd.f32 %v762, %v219
        %v764 = vadd.f32 %v763, %v220
        %v765 = vadd.f32 %v764, %v221
        %v766 = vadd.f32 %v765, %v222
        %v767 = vadd.f32 %v766, %v223
        %v768 = vadd.f32 %v767, %v224
        %v769 = vadd.f32 %v768, %v225
        %770 = vadd.xlane.f32.xlu0 %v769
        %v771 = vpop.xlane.xlu0 %770
        %v772 = vadd.f32 %v226, %v227
        %v773 = vadd.f32 %v772, %v228
        %v774 = vadd.f32 %v773, %v229
        %v775 = vadd.f32 %v774, %v230
        %v776 = vadd.f32 %v775, %v231
        %v777 = vadd.f32 %v776, %v232
        %v778 = vadd.f32 %v777, %v233
        %v779 = vadd.f32 %v778, %v234
        %v780 = vadd.f32 %v779, %v235
        %v781 = vadd.f32 %v780, %v236
        %v782 = vadd.f32 %v781, %v237
        %v783 = vadd.f32 %v782, %v238
        %v784 = vadd.f32 %v783, %v239
        %v785 = vadd.f32 %v784, %v240
        %v786 = vadd.f32 %v785, %v241
        %787 = vadd.xlane.f32.xlu0 %v786
        %v788 = vpop.xlane.xlu0 %787
        %v789 = vadd.f32 %v242, %v243
        %v790 = vadd.f32 %v789, %v244
        %v791 = vadd.f32 %v790, %v245
        %v792 = vadd.f32 %v791, %v246
        %v793 = vadd.f32 %v792, %v247
        %v794 = vadd.f32 %v793, %v248
        %v795 = vadd.f32 %v794, %v249
        %v796 = vadd.f32 %v795, %v250
        %v797 = vadd.f32 %v796, %v251
        %v798 = vadd.f32 %v797, %v252
        %v799 = vadd.f32 %v798, %v253
        %v800 = vadd.f32 %v799, %v254
        %v801 = vadd.f32 %v800, %v255
        %v802 = vadd.f32 %v801, %v256
        %v803 = vadd.f32 %v802, %v257
        %804 = vadd.xlane.f32.xlu0 %v803
        %v805 = vpop.xlane.xlu0 %804
        %v806 = vadd.f32 %v258, %v259
        %v807 = vadd.f32 %v806, %v260
        %v808 = vadd.f32 %v807, %v261
        %v809 = vadd.f32 %v808, %v262
        %v810 = vadd.f32 %v809, %v263
        %v811 = vadd.f32 %v810, %v264
        %v812 = vadd.f32 %v811, %v265
        %v813 = vadd.f32 %v812, %v266
        %v814 = vadd.f32 %v813, %v267
        %v815 = vadd.f32 %v814, %v268
        %v816 = vadd.f32 %v815, %v269
        %v817 = vadd.f32 %v816, %v270
        %v818 = vadd.f32 %v817, %v271
        %v819 = vadd.f32 %v818, %v272
        %v820 = vadd.f32 %v819, %v273
        %821 = vadd.xlane.f32.xlu0 %v820
        %v822 = vpop.xlane.xlu0 %821
        %v823 = vadd.f32 %v274, %v275
        %v824 = vadd.f32 %v823, %v276
        %v825 = vadd.f32 %v824, %v277
        %v826 = vadd.f32 %v825, %v278
        %v827 = vadd.f32 %v826, %v279
        %v828 = vadd.f32 %v827, %v280
        %v829 = vadd.f32 %v828, %v281
        %v830 = vadd.f32 %v829, %v282
        %v831 = vadd.f32 %v830, %v283
        %v832 = vadd.f32 %v831, %v284
        %v833 = vadd.f32 %v832, %v285
        %v834 = vadd.f32 %v833, %v286
        %v835 = vadd.f32 %v834, %v287
        %v836 = vadd.f32 %v835, %v288
        %v837 = vadd.f32 %v836, %v289
        %838 = vadd.xlane.f32.xlu0 %v837
        %v839 = vpop.xlane.xlu0 %838
        %v840 = vadd.f32 %v290, %v291
        %v841 = vadd.f32 %v840, %v292
        %v842 = vadd.f32 %v841, %v293
        %v843 = vadd.f32 %v842, %v294
        %v844 = vadd.f32 %v843, %v295
        %v845 = vadd.f32 %v844, %v296
        %v846 = vadd.f32 %v845, %v297
        %v847 = vadd.f32 %v846, %v298
        %v848 = vadd.f32 %v847, %v299
        %v849 = vadd.f32 %v848, %v300
        %v850 = vadd.f32 %v849, %v301
        %v851 = vadd.f32 %v850, %v302
        %v852 = vadd.f32 %v851, %v303
        %v853 = vadd.f32 %v852, %v304
        %v854 = vadd.f32 %v853, %v305
        %855 = vadd.xlane.f32.xlu0 %v854
        %v856 = vpop.xlane.xlu0 %855
        %v857 = vadd.f32 %v306, %v307
        %v858 = vadd.f32 %v857, %v308
        %v859 = vadd.f32 %v858, %v309
        %v860 = vadd.f32 %v859, %v310
        %v861 = vadd.f32 %v860, %v311
        %v862 = vadd.f32 %v861, %v312
        %v863 = vadd.f32 %v862, %v313
        %v864 = vadd.f32 %v863, %v314
        %v865 = vadd.f32 %v864, %v315
        %v866 = vadd.f32 %v865, %v316
        %v867 = vadd.f32 %v866, %v317
        %v868 = vadd.f32 %v867, %v318
        %v869 = vadd.f32 %v868, %v319
        %v870 = vadd.f32 %v869, %v320
        %v871 = vadd.f32 %v870, %v321
        %872 = vadd.xlane.f32.xlu0 %v871
        %v873 = vpop.xlane.xlu0 %872
        %v874 = vadd.f32 %v322, %v323
        %v875 = vadd.f32 %v874, %v324
        %v876 = vadd.f32 %v875, %v325
        %v877 = vadd.f32 %v876, %v326
        %v878 = vadd.f32 %v877, %v327
        %v879 = vadd.f32 %v878, %v328
        %v880 = vadd.f32 %v879, %v329
        %v881 = vadd.f32 %v880, %v330
        %v882 = vadd.f32 %v881, %v331
        %v883 = vadd.f32 %v882, %v332
        %v884 = vadd.f32 %v883, %v333
        %v885 = vadd.f32 %v884, %v334
        %v886 = vadd.f32 %v885, %v335
        %v887 = vadd.f32 %v886, %v336
        %v888 = vadd.f32 %v887, %v337
        %889 = vadd.xlane.f32.xlu0 %v888
        %v890 = vpop.xlane.xlu0 %889
        %v891 = vadd.f32 %v338, %v339
        %v892 = vadd.f32 %v891, %v340
        %v893 = vadd.f32 %v892, %v341
        %v894 = vadd.f32 %v893, %v342
        %v895 = vadd.f32 %v894, %v343
        %v896 = vadd.f32 %v895, %v344
        %v897 = vadd.f32 %v896, %v345
        %v898 = vadd.f32 %v897, %v346
        %v899 = vadd.f32 %v898, %v347
        %v900 = vadd.f32 %v899, %v348
        %v901 = vadd.f32 %v900, %v349
        %v902 = vadd.f32 %v901, %v350
        %v903 = vadd.f32 %v902, %v351
        %v904 = vadd.f32 %v903, %v352
        %v905 = vadd.f32 %v904, %v353
        %906 = vadd.xlane.f32.xlu0 %v905
        %v907 = vpop.xlane.xlu0 %906
        %v908 = vadd.f32 %v354, %v355
        %v909 = vadd.f32 %v908, %v356
        %v910 = vadd.f32 %v909, %v357
        %v911 = vadd.f32 %v910, %v358
        %v912 = vadd.f32 %v911, %v359
        %v913 = vadd.f32 %v912, %v360
        %v914 = vadd.f32 %v913, %v361
        %v915 = vadd.f32 %v914, %v362
        %v916 = vadd.f32 %v915, %v363
        %v917 = vadd.f32 %v916, %v364
        %v918 = vadd.f32 %v917, %v365
        %v919 = vadd.f32 %v918, %v366
        %v920 = vadd.f32 %v919, %v367
        %v921 = vadd.f32 %v920, %v368
        %v922 = vadd.f32 %v921, %v369
        %923 = vadd.xlane.f32.xlu0 %v922
        %v924 = vpop.xlane.xlu0 %923
        %v925 = vadd.f32 %v370, %v371
        %v926 = vadd.f32 %v925, %v372
        %v927 = vadd.f32 %v926, %v373
        %v928 = vadd.f32 %v927, %v374
        %v929 = vadd.f32 %v928, %v375
        %v930 = vadd.f32 %v929, %v376
        %v931 = vadd.f32 %v930, %v377
        %v932 = vadd.f32 %v931, %v378
        %v933 = vadd.f32 %v932, %v379
        %v934 = vadd.f32 %v933, %v380
        %v935 = vadd.f32 %v934, %v381
        %v936 = vadd.f32 %v935, %v382
        %v937 = vadd.f32 %v936, %v383
        %v938 = vadd.f32 %v937, %v384
        %v939 = vadd.f32 %v938, %v385
        %940 = vadd.xlane.f32.xlu0 %v939
        %v941 = vpop.xlane.xlu0 %940
        %v942 = vadd.f32 %v386, %v387
        %v943 = vadd.f32 %v942, %v388
        %v944 = vadd.f32 %v943, %v389
        %v945 = vadd.f32 %v944, %v390
        %v946 = vadd.f32 %v945, %v391
        %v947 = vadd.f32 %v946, %v392
        %v948 = vadd.f32 %v947, %v393
        %v949 = vadd.f32 %v948, %v394
        %v950 = vadd.f32 %v949, %v395
        %v951 = vadd.f32 %v950, %v396
        %v952 = vadd.f32 %v951, %v397
        %v953 = vadd.f32 %v952, %v398
        %v954 = vadd.f32 %v953, %v399
        %v955 = vadd.f32 %v954, %v400
        %v956 = vadd.f32 %v955, %v401
        %957 = vadd.xlane.f32.xlu0 %v956
        %v958 = vpop.xlane.xlu0 %957
        %v959 = vadd.f32 %v402, %v403
        %v960 = vadd.f32 %v959, %v404
        %v961 = vadd.f32 %v960, %v405
        %v962 = vadd.f32 %v961, %v406
        %v963 = vadd.f32 %v962, %v407
        %v964 = vadd.f32 %v963, %v408
        %v965 = vadd.f32 %v964, %v409
        %v966 = vadd.f32 %v965, %v410
        %v967 = vadd.f32 %v966, %v411
        %v968 = vadd.f32 %v967, %v412
        %v969 = vadd.f32 %v968, %v413
        %v970 = vadd.f32 %v969, %v414
        %v971 = vadd.f32 %v970, %v415
        %v972 = vadd.f32 %v971, %v416
        %v973 = vadd.f32 %v972, %v417
        %974 = vadd.xlane.f32.xlu0 %v973
        %v975 = vpop.xlane.xlu0 %974
        %v976 = vadd.f32 %v418, %v419
        %v977 = vadd.f32 %v976, %v420
        %v978 = vadd.f32 %v977, %v421
        %v979 = vadd.f32 %v978, %v422
        %v980 = vadd.f32 %v979, %v423
        %v981 = vadd.f32 %v980, %v424
        %v982 = vadd.f32 %v981, %v425
        %v983 = vadd.f32 %v982, %v426
        %v984 = vadd.f32 %v983, %v427
        %v985 = vadd.f32 %v984, %v428
        %v986 = vadd.f32 %v985, %v429
        %v987 = vadd.f32 %v986, %v430
        %v988 = vadd.f32 %v987, %v431
        %v989 = vadd.f32 %v988, %v432
        %v990 = vadd.f32 %v989, %v433
        %991 = vadd.xlane.f32.xlu0 %v990
        %v992 = vpop.xlane.xlu0 %991
        %v993 = vadd.f32 %v434, %v435
        %v994 = vadd.f32 %v993, %v436
        %v995 = vadd.f32 %v994, %v437
        %v996 = vadd.f32 %v995, %v438
        %v997 = vadd.f32 %v996, %v439
        %v998 = vadd.f32 %v997, %v440
        %v999 = vadd.f32 %v998, %v441
        %v1000 = vadd.f32 %v999, %v442
        %v1001 = vadd.f32 %v1000, %v443
        %v1002 = vadd.f32 %v1001, %v444
        %v1003 = vadd.f32 %v1002, %v445
        %v1004 = vadd.f32 %v1003, %v446
        %v1005 = vadd.f32 %v1004, %v447
        %v1006 = vadd.f32 %v1005, %v448
        %v1007 = vadd.f32 %v1006, %v449
        %1008 = vadd.xlane.f32.xlu0 %v1007
        %v1009 = vpop.xlane.xlu0 %1008
        %v1010 = vadd.f32 %v450, %v451
        %v1011 = vadd.f32 %v1010, %v452
        %v1012 = vadd.f32 %v1011, %v453
        %v1013 = vadd.f32 %v1012, %v454
        %v1014 = vadd.f32 %v1013, %v455
        %v1015 = vadd.f32 %v1014, %v456
        %v1016 = vadd.f32 %v1015, %v457
        %v1017 = vadd.f32 %v1016, %v458
        %v1018 = vadd.f32 %v1017, %v459
        %v1019 = vadd.f32 %v1018, %v460
        %v1020 = vadd.f32 %v1019, %v461
        %v1021 = vadd.f32 %v1020, %v462
        %v1022 = vadd.f32 %v1021, %v463
        %v1023 = vadd.f32 %v1022, %v464
        %v1024 = vadd.f32 %v1023, %v465
        %1025 = vadd.xlane.f32.xlu0 %v1024
        %v1026 = vpop.xlane.xlu0 %1025
        %v1027 = vadd.f32 %v466, %v467
        %v1028 = vadd.f32 %v1027, %v468
        %v1029 = vadd.f32 %v1028, %v469
        %v1030 = vadd.f32 %v1029, %v470
        %v1031 = vadd.f32 %v1030, %v471
        %v1032 = vadd.f32 %v1031, %v472
        %v1033 = vadd.f32 %v1032, %v473
        %v1034 = vadd.f32 %v1033, %v474
        %v1035 = vadd.f32 %v1034, %v475
        %v1036 = vadd.f32 %v1035, %v476
        %v1037 = vadd.f32 %v1036, %v477
        %v1038 = vadd.f32 %v1037, %v478
        %v1039 = vadd.f32 %v1038, %v479
        %v1040 = vadd.f32 %v1039, %v480
        %v1041 = vadd.f32 %v1040, %v481
        %1042 = vadd.xlane.f32.xlu0 %v1041
        %v1043 = vpop.xlane.xlu0 %1042
        %v1044 = vadd.f32 %v482, %v483
        %v1045 = vadd.f32 %v1044, %v484
        %v1046 = vadd.f32 %v1045, %v485
        %v1047 = vadd.f32 %v1046, %v486
        %v1048 = vadd.f32 %v1047, %v487
        %v1049 = vadd.f32 %v1048, %v488
        %v1050 = vadd.f32 %v1049, %v489
        %v1051 = vadd.f32 %v1050, %v490
        %v1052 = vadd.f32 %v1051, %v491
        %v1053 = vadd.f32 %v1052, %v492
        %v1054 = vadd.f32 %v1053, %v493
        %v1055 = vadd.f32 %v1054, %v494
        %v1056 = vadd.f32 %v1055, %v495
        %v1057 = vadd.f32 %v1056, %v496
        %v1058 = vadd.f32 %v1057, %v497
        %1059 = vadd.xlane.f32.xlu0 %v1058
        %v1060 = vpop.xlane.xlu0 %1059
        %v1061 = vadd.f32 %v498, %v499
        %v1062 = vadd.f32 %v1061, %v500
        %v1063 = vadd.f32 %v1062, %v501
        %v1064 = vadd.f32 %v1063, %v502
        %v1065 = vadd.f32 %v1064, %v503
        %v1066 = vadd.f32 %v1065, %v504
        %v1067 = vadd.f32 %v1066, %v505
        %v1068 = vadd.f32 %v1067, %v506
        %v1069 = vadd.f32 %v1068, %v507
        %v1070 = vadd.f32 %v1069, %v508
        %v1071 = vadd.f32 %v1070, %v509
        %v1072 = vadd.f32 %v1071, %v510
        %v1073 = vadd.f32 %v1072, %v511
        %v1074 = vadd.f32 %v1073, %v512
        %v1075 = vadd.f32 %v1074, %v513
        %1076 = vadd.xlane.f32.xlu0 %v1075
        %v1077 = vpop.xlane.xlu0 %1076
        %v1078 = vadd.f32 %v514, %v515
        %v1079 = vadd.f32 %v1078, %v516
        %v1080 = vadd.f32 %v1079, %v517
        %v1081 = vadd.f32 %v1080, %v518
        %v1082 = vadd.f32 %v1081, %v519
        %v1083 = vadd.f32 %v1082, %v520
        %v1084 = vadd.f32 %v1083, %v521
        %v1085 = vadd.f32 %v1084, %v522
        %v1086 = vadd.f32 %v1085, %v523
        %v1087 = vadd.f32 %v1086, %v524
        %v1088 = vadd.f32 %v1087, %v525
        %v1089 = vadd.f32 %v1088, %v526
        %v1090 = vadd.f32 %v1089, %v527
        %v1091 = vadd.f32 %v1090, %v528
        %v1092 = vadd.f32 %v1091, %v529
        %1093 = vadd.xlane.f32.xlu0 %v1092
        %v1094 = vpop.xlane.xlu0 %1093
        %v1095 = vadd.f32 %v530, %v531
        %v1096 = vadd.f32 %v1095, %v532
        %v1097 = vadd.f32 %v1096, %v533
        %v1098 = vadd.f32 %v1097, %v534
        %v1099 = vadd.f32 %v1098, %v535
        %v1100 = vadd.f32 %v1099, %v536
        %v1101 = vadd.f32 %v1100, %v537
        %v1102 = vadd.f32 %v1101, %v538
        %v1103 = vadd.f32 %v1102, %v539
        %v1104 = vadd.f32 %v1103, %v540
        %v1105 = vadd.f32 %v1104, %v541
        %v1106 = vadd.f32 %v1105, %v542
        %v1107 = vadd.f32 %v1106, %v543
        %v1108 = vadd.f32 %v1107, %v544
        %v1109 = vadd.f32 %v1108, %v545
        %1110 = vadd.xlane.f32.xlu0 %v1109
        %v1111 = vpop.xlane.xlu0 %1110
        %v1112 = vadd.f32 %v546, %v547
        %v1113 = vadd.f32 %v1112, %v548
        %v1114 = vadd.f32 %v1113, %v549
        %v1115 = vadd.f32 %v1114, %v550
        %v1116 = vadd.f32 %v1115, %v551
        %v1117 = vadd.f32 %v1116, %v552
        %v1118 = vadd.f32 %v1117, %v553
        %v1119 = vadd.f32 %v1118, %v554
        %v1120 = vadd.f32 %v1119, %v555
        %v1121 = vadd.f32 %v1120, %v556
        %v1122 = vadd.f32 %v1121, %v557
        %v1123 = vadd.f32 %v1122, %v558
        %v1124 = vadd.f32 %v1123, %v559
        %v1125 = vadd.f32 %v1124, %v560
        %v1126 = vadd.f32 %v1125, %v561
        %1127 = vadd.xlane.f32.xlu0 %v1126
        %v1128 = vpop.xlane.xlu0 %1127
        %v1129 = vadd.f32 %v562, %v563
        %v1130 = vadd.f32 %v1129, %v564
        %v1131 = vadd.f32 %v1130, %v565
        %v1132 = vadd.f32 %v1131, %v566
        %v1133 = vadd.f32 %v1132, %v567
        %v1134 = vadd.f32 %v1133, %v568
        %v1135 = vadd.f32 %v1134, %v569
        %v1136 = vadd.f32 %v1135, %v570
        %v1137 = vadd.f32 %v1136, %v571
        %v1138 = vadd.f32 %v1137, %v572
        %v1139 = vadd.f32 %v1138, %v573
        %v1140 = vadd.f32 %v1139, %v574
        %v1141 = vadd.f32 %v1140, %v575
        %v1142 = vadd.f32 %v1141, %v576
        %v1143 = vadd.f32 %v1142, %v577
        %1144 = vadd.xlane.f32.xlu0 %v1143
        %v1145 = vpop.xlane.xlu0 %1144
        %v1146 = vadd.f32 %v578, %v579
        %v1147 = vadd.f32 %v1146, %v580
        %v1148 = vadd.f32 %v1147, %v581
        %v1149 = vadd.f32 %v1148, %v582
        %v1150 = vadd.f32 %v1149, %v583
        %v1151 = vadd.f32 %v1150, %v584
        %v1152 = vadd.f32 %v1151, %v585
        %v1153 = vadd.f32 %v1152, %v586
        %v1154 = vadd.f32 %v1153, %v587
        %v1155 = vadd.f32 %v1154, %v588
        %v1156 = vadd.f32 %v1155, %v589
        %v1157 = vadd.f32 %v1156, %v590
        %v1158 = vadd.f32 %v1157, %v591
        %v1159 = vadd.f32 %v1158, %v592
        %v1160 = vadd.f32 %v1159, %v593
        %1161 = vadd.xlane.f32.xlu0 %v1160
        %v1162 = vpop.xlane.xlu0 %1161
        %v1163 = vadd.f32 %v594, %v595
        %v1164 = vadd.f32 %v1163, %v596
        %v1165 = vadd.f32 %v1164, %v597
        %v1166 = vadd.f32 %v1165, %v598
        %v1167 = vadd.f32 %v1166, %v599
        %v1168 = vadd.f32 %v1167, %v600
        %v1169 = vadd.f32 %v1168, %v601
        %v1170 = vadd.f32 %v1169, %v602
        %v1171 = vadd.f32 %v1170, %v603
        %v1172 = vadd.f32 %v1171, %v604
        %v1173 = vadd.f32 %v1172, %v605
        %v1174 = vadd.f32 %v1173, %v606
        %v1175 = vadd.f32 %v1174, %v607
        %v1176 = vadd.f32 %v1175, %v608
        %v1177 = vadd.f32 %v1176, %v609
        %1178 = vadd.xlane.f32.xlu0 %v1177
        %v1179 = vpop.xlane.xlu0 %1178
        %v1180 = vadd.f32 %v610, %v611
        %v1181 = vadd.f32 %v1180, %v612
        %v1182 = vadd.f32 %v1181, %v613
        %v1183 = vadd.f32 %v1182, %v614
        %v1184 = vadd.f32 %v1183, %v615
        %v1185 = vadd.f32 %v1184, %v616
        %v1186 = vadd.f32 %v1185, %v617
        %v1187 = vadd.f32 %v1186, %v618
        %v1188 = vadd.f32 %v1187, %v619
        %v1189 = vadd.f32 %v1188, %v620
        %v1190 = vadd.f32 %v1189, %v621
        %v1191 = vadd.f32 %v1190, %v622
        %v1192 = vadd.f32 %v1191, %v623
        %v1193 = vadd.f32 %v1192, %v624
        %v1194 = vadd.f32 %v1193, %v625
        %1195 = vadd.xlane.f32.xlu0 %v1194
        %v1196 = vpop.xlane.xlu0 %1195
        %v1197 = vadd.f32 %v626, %v627
        %v1198 = vadd.f32 %v1197, %v628
        %v1199 = vadd.f32 %v1198, %v629
        %v1200 = vadd.f32 %v1199, %v630
        %v1201 = vadd.f32 %v1200, %v631
        %v1202 = vadd.f32 %v1201, %v632
        %v1203 = vadd.f32 %v1202, %v633
        %v1204 = vadd.f32 %v1203, %v634
        %v1205 = vadd.f32 %v1204, %v635
        %v1206 = vadd.f32 %v1205, %v636
        %v1207 = vadd.f32 %v1206, %v637
        %v1208 = vadd.f32 %v1207, %v638
        %v1209 = vadd.f32 %v1208, %v639
        %v1210 = vadd.f32 %v1209, %v640
        %v1211 = vadd.f32 %v1210, %v641
        %1212 = vadd.xlane.f32.xlu0 %v1211
        %v1213 = vpop.xlane.xlu0 %1212
        %v1214 = vadd.f32 %v642, %v643
        %v1215 = vadd.f32 %v1214, %v644
        %v1216 = vadd.f32 %v1215, %v645
        %v1217 = vadd.f32 %v1216, %v646
        %v1218 = vadd.f32 %v1217, %v647
        %v1219 = vadd.f32 %v1218, %v648
        %v1220 = vadd.f32 %v1219, %v649
        %v1221 = vadd.f32 %v1220, %v650
        %v1222 = vadd.f32 %v1221, %v651
        %v1223 = vadd.f32 %v1222, %v652
        %v1224 = vadd.f32 %v1223, %v653
        %v1225 = vadd.f32 %v1224, %v654
        %v1226 = vadd.f32 %v1225, %v655
        %v1227 = vadd.f32 %v1226, %v656
        %v1228 = vadd.f32 %v1227, %v657
        %1229 = vadd.xlane.f32.xlu0 %v1228
        %v1230 = vpop.xlane.xlu0 %1229
        %v1231 = vadd.f32 %v658, %v659
        %v1232 = vadd.f32 %v1231, %v660
        %v1233 = vadd.f32 %v1232, %v661
        %v1234 = vadd.f32 %v1233, %v662
        %v1235 = vadd.f32 %v1234, %v663
        %v1236 = vadd.f32 %v1235, %v664
        %v1237 = vadd.f32 %v1236, %v665
        %v1238 = vadd.f32 %v1237, %v666
        %v1239 = vadd.f32 %v1238, %v667
        %v1240 = vadd.f32 %v1239, %v668
        %v1241 = vadd.f32 %v1240, %v669
        %v1242 = vadd.f32 %v1241, %v670
        %v1243 = vadd.f32 %v1242, %v671
        %v1244 = vadd.f32 %v1243, %v672
        %v1245 = vadd.f32 %v1244, %v673
        %1246 = vadd.xlane.f32.xlu0 %v1245
        %v1247 = vpop.xlane.xlu0 %1246
        %v1248 = vadd.f32 %v674, %v675
        %v1249 = vadd.f32 %v1248, %v676
        %v1250 = vadd.f32 %v1249, %v677
        %v1251 = vadd.f32 %v1250, %v678
        %v1252 = vadd.f32 %v1251, %v679
        %v1253 = vadd.f32 %v1252, %v680
        %v1254 = vadd.f32 %v1253, %v681
        %v1255 = vadd.f32 %v1254, %v682
        %v1256 = vadd.f32 %v1255, %v683
        %v1257 = vadd.f32 %v1256, %v684
        %v1258 = vadd.f32 %v1257, %v685
        %v1259 = vadd.f32 %v1258, %v686
        %v1260 = vadd.f32 %v1259, %v687
        %v1261 = vadd.f32 %v1260, %v688
        %v1262 = vadd.f32 %v1261, %v689
        %1263 = vadd.xlane.f32.xlu0 %v1262
        %v1264 = vpop.xlane.xlu0 %1263
        %v1265 = vadd.f32 %v690, %v691
        %v1266 = vadd.f32 %v1265, %v692
        %v1267 = vadd.f32 %v1266, %v693
        %v1268 = vadd.f32 %v1267, %v694
        %v1269 = vadd.f32 %v1268, %v695
        %v1270 = vadd.f32 %v1269, %v696
        %v1271 = vadd.f32 %v1270, %v697
        %v1272 = vadd.f32 %v1271, %v698
        %v1273 = vadd.f32 %v1272, %v699
        %v1274 = vadd.f32 %v1273, %v700
        %v1275 = vadd.f32 %v1274, %v701
        %v1276 = vadd.f32 %v1275, %v702
        %v1277 = vadd.f32 %v1276, %v703
        %v1278 = vadd.f32 %v1277, %v704
        %v1279 = vadd.f32 %v1278, %v705
        %1280 = vadd.xlane.f32.xlu0 %v1279
        %v1281 = vpop.xlane.xlu0 %1280
        %v1282 = vadd.f32 %v706, %v754
        %v1283 = vadd.f32 %v707, %v771
        %v1284 = vadd.f32 %v708, %v788
        %v1285 = vadd.f32 %v709, %v805
        %v1286 = vadd.f32 %v710, %v822
        %v1287 = vadd.f32 %v711, %v839
        %v1288 = vadd.f32 %v712, %v856
        %v1289 = vadd.f32 %v713, %v873
        %v1290 = vadd.f32 %v714, %v890
        %v1291 = vadd.f32 %v715, %v907
        %v1292 = vadd.f32 %v716, %v924
        %v1293 = vadd.f32 %v717, %v941
        %v1294 = vadd.f32 %v718, %v958
        %v1295 = vadd.f32 %v719, %v975
        %v1296 = vadd.f32 %v720, %v992
        %v1297 = vadd.f32 %v721, %v1009
        %v1298 = vadd.f32 %v722, %v1026
        %v1299 = vadd.f32 %v723, %v1043
        %v1300 = vadd.f32 %v724, %v1060
        %v1301 = vadd.f32 %v725, %v1077
        %v1302 = vadd.f32 %v726, %v1094
        %v1303 = vadd.f32 %v727, %v1111
        %v1304 = vadd.f32 %v728, %v1128
        %v1305 = vadd.f32 %v729, %v1145
        %v1306 = vadd.f32 %v730, %v1162
        %v1307 = vadd.f32 %v731, %v1179
        %v1308 = vadd.f32 %v732, %v1196
        %v1309 = vadd.f32 %v733, %v1213
        %v1310 = vadd.f32 %v734, %v1230
        %v1311 = vadd.f32 %v735, %v1247
        %v1312 = vadd.f32 %v736, %v1264
        %v1313 = vadd.f32 %v737, %v1281
        %vm1314 = vcmask 7168
        %1315 = vst.msk [vmem:[%s155] sm:$0xff] %vm1314, %v1282
        %1316 = vst.msk [vmem:[%s155 + $0x8] sm:$0xff] %vm1314, %v1283
        %1317 = vst.msk [vmem:[%s155 + $0x10] sm:$0xff] %vm1314, %v1284
        %1318 = vst.msk [vmem:[%s155 + $0x18] sm:$0xff] %vm1314, %v1285
        %1319 = vst.msk [vmem:[%s155 + $0x20] sm:$0xff] %vm1314, %v1286
        %1320 = vst.msk [vmem:[%s155 + $0x28] sm:$0xff] %vm1314, %v1287
        %1321 = vst.msk [vmem:[%s155 + $0x30] sm:$0xff] %vm1314, %v1288
        %1322 = vst.msk [vmem:[%s155 + $0x38] sm:$0xff] %vm1314, %v1289
        %1323 = vst.msk [vmem:[%s155 + $0x40] sm:$0xff] %vm1314, %v1290
        %1324 = vst.msk [vmem:[%s155 + $0x48] sm:$0xff] %vm1314, %v1291
        %1325 = vst.msk [vmem:[%s155 + $0x50] sm:$0xff] %vm1314, %v1292
        %1326 = vst.msk [vmem:[%s155 + $0x58] sm:$0xff] %vm1314, %v1293
        %1327 = vst.msk [vmem:[%s155 + $0x60] sm:$0xff] %vm1314, %v1294
        %1328 = vst.msk [vmem:[%s155 + $0x68] sm:$0xff] %vm1314, %v1295
        %1329 = vst.msk [vmem:[%s155 + $0x70] sm:$0xff] %vm1314, %v1296
        %1330 = vst.msk [vmem:[%s155 + $0x78] sm:$0xff] %vm1314, %v1297
        %1331 = vst.msk [vmem:[%s155 + $0x80] sm:$0xff] %vm1314, %v1298
        %1332 = vst.msk [vmem:[%s155 + $0x88] sm:$0xff] %vm1314, %v1299
        %1333 = vst.msk [vmem:[%s155 + $0x90] sm:$0xff] %vm1314, %v1300
        %1334 = vst.msk [vmem:[%s155 + $0x98] sm:$0xff] %vm1314, %v1301
        %1335 = vst.msk [vmem:[%s155 + $0xa0] sm:$0xff] %vm1314, %v1302
        %1336 = vst.msk [vmem:[%s155 + $0xa8] sm:$0xff] %vm1314, %v1303
        %1337 = vst.msk [vmem:[%s155 + $0xb0] sm:$0xff] %vm1314, %v1304
        %1338 = vst.msk [vmem:[%s155 + $0xb8] sm:$0xff] %vm1314, %v1305
        %1339 = vst.msk [vmem:[%s155 + $0xc0] sm:$0xff] %vm1314, %v1306
        %1340 = vst.msk [vmem:[%s155 + $0xc8] sm:$0xff] %vm1314, %v1307
        %1341 = vst.msk [vmem:[%s155 + $0xd0] sm:$0xff] %vm1314, %v1308
        %1342 = vst.msk [vmem:[%s155 + $0xd8] sm:$0xff] %vm1314, %v1309
        %1343 = vst.msk [vmem:[%s155 + $0xe0] sm:$0xff] %vm1314, %v1310
        %1344 = vst.msk [vmem:[%s155 + $0xe8] sm:$0xff] %vm1314, %v1311
        %1345 = vst.msk [vmem:[%s155 + $0xf0] sm:$0xff] %vm1314, %v1312
        %1346 = vst.msk [vmem:[%s155 + $0xf8] sm:$0xff] %vm1314, %v1313
        %s1347 = smul.u32 32, %s19
        %p1348 = scmp.lt.s32.totalorder %s1347, 255
        %s1349 = scalar_select %p1348, %s1347, 255
        %s1350 = smul.addr %s1349, 8
        %s1351 = scalar_lea.vmem %s1, %s1350
        // Predicated region
        $region33: #{tpu_custom_call.1} parent=23 // pred_check
          %p1352 = pneg %p73
        $region34: #{tpu_custom_call.1} parent=23 // pred_check_branch
          %1354 = sbr.rel (%p1352) target = $region36
        $region35: #{tpu_custom_call.1} parent=23 // pred_region
          %s1355 = smul.u32 32, %s19
        $region36: #{tpu_custom_call.1} parent=23 // pred_fallthru
          _
      $region24: #{tpu_custom_call.1} parent=5 // pred_fallthru
        _
      %p1356 = scmp.le.s32.totalorder 2, %s10
      // Predicated region
      $region37: #{tpu_custom_call.1} parent=5 // pred_check
        %p1357 = pneg %p1356
      $region38: #{tpu_custom_call.1} parent=5 // pred_check_branch
        %1359 = sbr.rel (%p1357) target = $region40
      $region39: #{tpu_custom_call.1} parent=5 // pred_region
        %s1360 = ssub.s32 %s10, 2
        // Predicated region
        $region41: #{tpu_custom_call.1} parent=39 // pred_check
          %p1361 = pneg %p79
        $region42: #{tpu_custom_call.1} parent=39 // pred_check_branch
          %1363 = sbr.rel (%p1361) target = $region44
        $region43: #{tpu_custom_call.1} parent=39 // pred_region
          %s1364 = smul.u32 32, %s21
          %p1365 = scmp.lt.s32.totalorder %s1364, 255
          %s1366 = scalar_select %p1365, %s1364, 255
          %s1367 = smul.addr %s1366, 8
          %s1368 = scalar_lea.vmem %s1, %s1367
        $region44: #{tpu_custom_call.1} parent=39 // pred_fallthru
          _
      $region40: #{tpu_custom_call.1} parent=5 // pred_fallthru
        _
    $region6: #{tpu_custom_call.1} parent=1 // loop_footer
      %s14 = sadd.s32 1, %s10
    $region7: #{tpu_custom_call.1} parent=1 // loop_footer_branch
      %9 = sbr.rel target = $region3
    $region8: #{tpu_custom_call.1} parent=1 // loop_exit
      _
    %1369 = vsyncpa [#allocation3], 1
    %s1370 = scalar_lea.sflag [#allocation3], 1
    %1371 = vsyncpa %s1370, 1

</llo_original>
